<compile_context>
chip_gen: v6e
topology: v6e:2x2x1
jax: 0.10.0
libtpu: 0.0.40
codegen_flags: <defaults>
</compile_context>

<pallas_src>
import numpy as np

import jax
import jax.numpy as jnp
from jax.experimental import pallas as pl
from jax.experimental.pallas import tpu as pltpu

NEG_SLOPE = 0.01   # nn.LeakyReLU default negative_slope
BN_EPS = 1e-5      # nn.BatchNorm1d default eps
LANE = 128
SUBLANE = 8


def _leaky_relu(x):
    return jnp.where(x > 0, x, NEG_SLOPE * x)


def _round_up(x, m):
    return (x + m - 1) // m * m


def _cdiv(a, b):
    return -(-a // b)


# ---------------------------------------------------------------------------
# Kernel
# ---------------------------------------------------------------------------
def _make_dense_resnet_kernel(has_stem, resize_flags, compute_dtype):
    """Kernel statically specialized for this DenseResnet config.

    The activation tile lives in vregs/VMEM across the whole block stack; only
    x and the final output touch HBM per grid step.
    """
    # TODO(synk): for very deep stacks (n_blocks > ~8) switch the static unroll to a
    #             lax.fori_loop over stacked per-block weights to bound VMEM live ranges.

    def kernel(*refs):
        x_ref, o_ref = refs[0], refs[-1]
        it = iter(refs[1:-1])

        h_c = x_ref[...]                                   # compute_dtype, lane-padded
        if has_stem:
            w0, b0 = next(it), next(it)
            h32 = jnp.dot(h_c, w0[...],
                          preferred_element_type=jnp.float32) + b0[...]
            h_c = h32.astype(compute_dtype)
        else:
            h32 = h_c.astype(jnp.float32)

        for has_resize in resize_flags:
            w1, b1, w2, b2 = next(it), next(it), next(it), next(it)
            # lin1 + folded bn1 + leaky_relu
            t = jnp.dot(h_c, w1[...],
                        preferred_element_type=jnp.float32) + b1[...]
            t = _leaky_relu(t)
            # lin2 + folded bn2
            t = jnp.dot(t.astype(compute_dtype), w2[...],
                        preferred_element_type=jnp.float32) + b2[...]
            # residual path (resize = Linear + BN when block dims change)
            if has_resize:
                wr, br = next(it), next(it)
                identity = jnp.dot(h_c, wr[...],
                                   preferred_element_type=jnp.float32) + br[...]
            else:
                identity = h32
            h32 = _leaky_relu(t + identity)
            h_c = h32.astype(compute_dtype)

        o_ref[...] = h32.astype(o_ref.dtype)

    return kernel


# ---------------------------------------------------------------------------
# Parameter folding / padding (wrapper-side, all static at trace time)
# ---------------------------------------------------------------------------
def _fold_linear_bn(w, b, bn):
    """Fold eval-mode BatchNorm1d into the preceding Linear: y = x @ W' + b'."""
    scale = bn["gamma"] / jnp.sqrt(bn["var"] + BN_EPS)
    shift = bn["beta"] - bn["mean"] * scale
    return w * scale[None, :], b * scale + shift


def _pad_mat(w, pk, pn, dtype):
    out = jnp.zeros((pk, pn), jnp.float32)
    out = out.at[: w.shape[0], : w.shape[1]].set(w.astype(jnp.float32))
    return out.astype(dtype)


def _pad_bias(b, pn):
    out = jnp.zeros((1, pn), jnp.float32)
    return out.at[0, : b.shape[0]].set(b.astype(jnp.float32))


def _build_operands(params, input_dim, blocks_dims, compute_dtype):
    """Fold BN into linears, pad each layer to its own lane-dense width, and
    emit the flat operand list (no zero placeholders)."""
    p_in = _round_up(input_dim, LANE)
    p_dims = [_round_up(d, LANE) for d in blocks_dims]

    has_stem = "stem" in params
    ops = []
    if has_stem:
        st = params["stem"]
        w0, b0 = _fold_linear_bn(st["lin"]["w"], st["lin"]["b"], st["bn"])
        ops += [_pad_mat(w0, p_in, p_dims[0], compute_dtype),
                _pad_bias(b0, p_dims[0])]

    resize_flags = []
    pk = p_dims[0]                      # == p_in when there is no stem
    for i, blk in enumerate(params["blocks"]):
        pn = p_dims[i + 1]
        w1, b1 = _fold_linear_bn(blk["lin1"]["w"], blk["lin1"]["b"], blk["bn1"])
        w2, b2 = _fold_linear_bn(blk["lin2"]["w"], blk["lin2"]["b"], blk["bn2"])
        ops += [_pad_mat(w1, pk, pn, compute_dtype), _pad_bias(b1, pn),
                _pad_mat(w2, pn, pn, compute_dtype), _pad_bias(b2, pn)]
        if blk.get("resize") is not None:
            rs = blk["resize"]
            wr, br = _fold_linear_bn(rs["lin"]["w"], rs["lin"]["b"], rs["bn"])
            ops += [_pad_mat(wr, pk, pn, compute_dtype), _pad_bias(br, pn)]
            resize_flags.append(True)
        else:
            resize_flags.append(False)
        pk = pn

    return has_stem, tuple(resize_flags), ops, p_in, p_dims


def _vmem_limit_bytes():
    """~3/4 of physical VMEM: ~96 MiB on v5e/v6e (128 MiB), ~48 MiB on v7x (64 MiB)."""
    try:
        info = pltpu.get_tpu_info()
        cap = getattr(info, "vmem_capacity_bytes", None)
        if cap is None:
            cap = getattr(info, "vmem_size_bytes", None)
        if cap:
            return int(min(cap * 3 // 4, 112 * 1024 * 1024))
    except Exception:
        pass
    return 48 * 1024 * 1024


# ---------------------------------------------------------------------------
# Public forward
# ---------------------------------------------------------------------------
def dense_resnet_forward(x, params, input_dim, blocks_dims, *, tile_b=512,
                         compute_dtype=jnp.bfloat16, out_dtype=None):
    """Fused DenseResnet forward (eval mode). x: (B, input_dim)."""
    assert len(blocks_dims) >= 2, "need at least one BasicBlock"
    B, d_in = x.shape
    assert d_in == input_dim
    out_dim = blocks_dims[-1]
    out_dtype = compute_dtype if out_dtype is None else out_dtype

    has_stem, resize_flags, param_ops, p_in, p_dims = _build_operands(
        params, input_dim, blocks_dims, compute_dtype)
    p_out = p_dims[-1]

    # Batch tiling: minimal per-tile padding (< 8 rows) and >= 2 grid steps when
    # B >= 16 so ("parallel",) can shard across the two v7x TensorCores.
    n_tiles = max(1, _cdiv(B, tile_b))
    if n_tiles == 1 and B >= 16:
        n_tiles = 2
    tb = _round_up(_cdiv(B, n_tiles), SUBLANE)
    B_pad = n_tiles * tb

    # x stream: cast to compute dtype + lane/batch pad in ONE fused wrapper op;
    # skipped entirely when x is already the right shape/dtype.
    if B_pad == B and p_in == d_in and x.dtype == jnp.dtype(compute_dtype):
        x_in = x
    else:
        x_in = jnp.zeros((B_pad, p_in), compute_dtype).at[:B, :d_in].set(
            x.astype(compute_dtype))

    row_map = lambda i: (i, 0)          # x / out: blocked over batch
    const_map = lambda i: (0, 0)        # weights: resident across grid steps

    def make_specs(single_buffer_weights):
        wkw = dict(pipeline_mode=pl.Buffered(1)) if single_buffer_weights else {}
        in_specs = [pl.BlockSpec((tb, p_in), row_map)]
        for op in param_ops:
            in_specs.append(pl.BlockSpec(op.shape, const_map, **wkw))
        out_specs = pl.BlockSpec((tb, p_out), row_map)
        return in_specs, out_specs

    # Advisory cost estimate for XLA scheduling around the custom call.
    weight_ops = [op for op in param_ops if op.shape[0] > 1]
    flops = 2 * B_pad * sum(int(w.shape[0]) * int(w.shape[1]) for w in weight_ops)
    bytes_accessed = int(x_in.size) * x_in.dtype.itemsize
    bytes_accessed += sum(int(o.size) * o.dtype.itemsize for o in param_ops)
    bytes_accessed += B_pad * p_out * np.dtype(out_dtype).itemsize

    kernel = _make_dense_resnet_kernel(has_stem, resize_flags, compute_dtype)
    cparams = pltpu.CompilerParams(
        dimension_semantics=("parallel",),
        vmem_limit_bytes=_vmem_limit_bytes())
    cost = pl.CostEstimate(flops=flops, transcendentals=0,
                           bytes_accessed=bytes_accessed)

    def run(single_buffer_weights):
        in_specs, out_specs = make_specs(single_buffer_weights)
        y = pl.pallas_call(
            kernel,
            out_shape=jax.ShapeDtypeStruct((B_pad, p_out), out_dtype),
            grid=(n_tiles,),
            in_specs=in_specs,
            out_specs=out_specs,
            compiler_params=cparams,
            cost_estimate=cost,
        )(x_in, *param_ops)
        return jax.block_until_ready(y)

    try:
        # Single-buffer the never-refetched weights (halves weight VMEM residency).
        y_pad = run(single_buffer_weights=True)
    except Exception:
        # Fallback for jax builds where pipeline_mode=pl.Buffered(1) is unsupported.
        y_pad = run(single_buffer_weights=False)

    return y_pad[:B, :out_dim]


# ---------------------------------------------------------------------------
# Deterministic init + pure-JAX reference (eval-mode PyTorch semantics)
# ---------------------------------------------------------------------------
def _init_linear(key, d_in, d_out, dtype=jnp.float32):
    kw, kb = jax.random.split(key)
    lim = 1.0 / (d_in ** 0.5)
    return {"w": jax.random.uniform(kw, (d_in, d_out), dtype, -lim, lim),
            "b": jax.random.uniform(kb, (d_out,), dtype, -lim, lim)}


def _init_bn(key, d, dtype=jnp.float32):
    k1, k2, k3, k4 = jax.random.split(key, 4)
    return {"gamma": 1.0 + 0.1 * jax.random.normal(k1, (d,), dtype),
            "beta": 0.1 * jax.random.normal(k2, (d,), dtype),
            "mean": 0.1 * jax.random.normal(k3, (d,), dtype),
            "var": 1.0 + 0.2 * jax.random.uniform(k4, (d,), dtype)}


def init_params(key, input_dim, blocks_dims, dtype=jnp.float32):
    n_blocks = len(blocks_dims) - 1
    keys = jax.random.split(key, 2 + 6 * n_blocks)
    params = {"blocks": []}
    k = 0
    if input_dim != blocks_dims[0]:
        params["stem"] = {"lin": _init_linear(keys[k], input_dim, blocks_dims[0], dtype),
                          "bn": _init_bn(keys[k + 1], blocks_dims[0], dtype)}
    k = 2
    for i in range(1, len(blocks_dims)):
        d_in, d_out = blocks_dims[i - 1], blocks_dims[i]
        blk = {"lin1": _init_linear(keys[k], d_in, d_out, dtype),
               "bn1": _init_bn(keys[k + 1], d_out, dtype),
               "lin2": _init_linear(keys[k + 2], d_out, d_out, dtype),
               "bn2": _init_bn(keys[k + 3], d_out, dtype),
               "resize": None}
        if d_in != d_out:
            blk["resize"] = {"lin": _init_linear(keys[k + 4], d_in, d_out, dtype),
                             "bn": _init_bn(keys[k + 5], d_out, dtype)}
        params["blocks"].append(blk)
        k += 6
    return params


def _bn_eval(x, bn):
    return (x - bn["mean"]) / jnp.sqrt(bn["var"] + BN_EPS) * bn["gamma"] + bn["beta"]


def reference_forward(x, params):
    h = x
    if "stem" in params:
        st = params["stem"]
        h = _bn_eval(h @ st["lin"]["w"] + st["lin"]["b"], st["bn"])
    for blk in params["blocks"]:
        identity = h
        t = _bn_eval(h @ blk["lin1"]["w"] + blk["lin1"]["b"], blk["bn1"])
        t = _leaky_relu(t)
        t = _bn_eval(t @ blk["lin2"]["w"] + blk["lin2"]["b"], blk["bn2"])
        if blk.get("resize") is not None:
            rs = blk["resize"]
            identity = _bn_eval(h @ rs["lin"]["w"] + rs["lin"]["b"], rs["bn"])
        h = _leaky_relu(t + identity)
    return h


# ---------------------------------------------------------------------------
if __name__ == "__main__":
    key = jax.random.PRNGKey(0)
    kx, kp = jax.random.split(key)

    # Small shapes exercising every path: stem (24->32), block0 32->32 (no
    # resize), block1 32->16 (resize Linear+BN on the identity path).
    input_dim = 24
    blocks_dims = [32, 32, 16]
    B = 8

    x = jax.random.normal(kx, (B, input_dim), jnp.float32)
    params = init_params(kp, input_dim, blocks_dims)
    y_ref = reference_forward(x, params)

    # f32 compute path: tight check of the fused-kernel mechanics.
    y32 = dense_resnet_forward(x, params, input_dim, blocks_dims,
                               compute_dtype=jnp.float32)
    y32 = jax.block_until_ready(y32)
    assert y32.shape == (B, blocks_dims[-1])
    err32 = float(jnp.max(jnp.abs(y32 - y_ref)))
    assert jnp.allclose(y32, y_ref, atol=1e-4, rtol=1e-4), \
        f"f32 mismatch vs reference (max err {err32})"

    # Default bf16 path (half the HBM bytes, 2x MXU on v6e/v7x): loose tolerance
    # because precision loss is expected, not a bug.
    ybf = dense_resnet_forward(x, params, input_dim, blocks_dims)
    ybf = jax.block_until_ready(ybf)
    assert ybf.shape == (B, blocks_dims[-1])
    errbf = float(jnp.max(jnp.abs(ybf.astype(jnp.float32) - y_ref)))
    assert errbf < 0.2, f"bf16 mismatch too large (max err {errbf})"

    print("KERNEL_OK")
</pallas_src>

<mosaic_0001>
module attributes {stable_mosaic.version = 11 : i64} {
  func.func @kernel(%arg0: i32, %arg1: memref<8x128xf32, #tpu.memory_space<vmem>>, %arg2: memref<128x128xf32, #tpu.memory_space<vmem>>, %arg3: memref<1x128xf32, #tpu.memory_space<vmem>>, %arg4: memref<128x128xf32, #tpu.memory_space<vmem>>, %arg5: memref<1x128xf32, #tpu.memory_space<vmem>>, %arg6: memref<128x128xf32, #tpu.memory_space<vmem>>, %arg7: memref<1x128xf32, #tpu.memory_space<vmem>>, %arg8: memref<128x128xf32, #tpu.memory_space<vmem>>, %arg9: memref<1x128xf32, #tpu.memory_space<vmem>>, %arg10: memref<128x128xf32, #tpu.memory_space<vmem>>, %arg11: memref<1x128xf32, #tpu.memory_space<vmem>>, %arg12: memref<128x128xf32, #tpu.memory_space<vmem>>, %arg13: memref<1x128xf32, #tpu.memory_space<vmem>>, %arg14: memref<8x128xf32, #tpu.memory_space<vmem>>) attributes {dimension_semantics = [#tpu.dimension_semantics<parallel>], iteration_bounds = array<i64: 1>, scalar_prefetch = 0 : i64, scratch_operands = 0 : i64, tpu.core_type = #tpu.core_type<tc>, window_params = [{transform_indices = @transform_0, window_bounds = array<i64: 8, 128>}, {pipeline_mode = #tpu.pipeline_mode<synchronous>, transform_indices = @transform_1, window_bounds = array<i64: 128, 128>}, {pipeline_mode = #tpu.pipeline_mode<synchronous>, transform_indices = @transform_2, window_bounds = array<i64: 1, 128>}, {pipeline_mode = #tpu.pipeline_mode<synchronous>, transform_indices = @transform_3, window_bounds = array<i64: 128, 128>}, {pipeline_mode = #tpu.pipeline_mode<synchronous>, transform_indices = @transform_4, window_bounds = array<i64: 1, 128>}, {pipeline_mode = #tpu.pipeline_mode<synchronous>, transform_indices = @transform_5, window_bounds = array<i64: 128, 128>}, {pipeline_mode = #tpu.pipeline_mode<synchronous>, transform_indices = @transform_6, window_bounds = array<i64: 1, 128>}, {pipeline_mode = #tpu.pipeline_mode<synchronous>, transform_indices = @transform_7, window_bounds = array<i64: 128, 128>}, {pipeline_mode = #tpu.pipeline_mode<synchronous>, transform_indices = @transform_8, window_bounds = array<i64: 1, 128>}, {pipeline_mode = #tpu.pipeline_mode<synchronous>, transform_indices = @transform_9, window_bounds = array<i64: 128, 128>}, {pipeline_mode = #tpu.pipeline_mode<synchronous>, transform_indices = @transform_10, window_bounds = array<i64: 1, 128>}, {pipeline_mode = #tpu.pipeline_mode<synchronous>, transform_indices = @transform_11, window_bounds = array<i64: 128, 128>}, {pipeline_mode = #tpu.pipeline_mode<synchronous>, transform_indices = @transform_12, window_bounds = array<i64: 1, 128>}, {transform_indices = @transform_13, window_bounds = array<i64: 8, 128>}]} {
    %c0 = arith.constant 0 : index
    %c0_0 = arith.constant 0 : index
    %0 = vector.load %arg1[%c0, %c0_0] : memref<8x128xf32, #tpu.memory_space<vmem>>, vector<8x128xf32>
    %c0_1 = arith.constant 0 : index
    %c0_2 = arith.constant 0 : index
    %1 = vector.load %arg2[%c0_1, %c0_2] : memref<128x128xf32, #tpu.memory_space<vmem>>, vector<128x128xf32>
    %cst = arith.constant dense<0.000000e+00> : vector<8x128xf32>
    %2 = tpu.matmul %0, %1, %cst {dimension_numbers = #tpu.dot_dimension_numbers<[1], [0], [0], [1], [0, 0, 1, 1], [], []>} : vector<8x128xf32>, vector<128x128xf32>, vector<8x128xf32> -> vector<8x128xf32>
    %c0_3 = arith.constant 0 : index
    %c0_4 = arith.constant 0 : index
    %3 = vector.load %arg3[%c0_3, %c0_4] : memref<1x128xf32, #tpu.memory_space<vmem>>, vector<1x128xf32>
    %4 = vector.broadcast %3 : vector<1x128xf32> to vector<8x128xf32>
    %5 = arith.addf %2, %4 : vector<8x128xf32>
    %c0_5 = arith.constant 0 : index
    %c0_6 = arith.constant 0 : index
    %6 = vector.load %arg4[%c0_5, %c0_6] : memref<128x128xf32, #tpu.memory_space<vmem>>, vector<128x128xf32>
    %cst_7 = arith.constant dense<0.000000e+00> : vector<8x128xf32>
    %7 = tpu.matmul %5, %6, %cst_7 {dimension_numbers = #tpu.dot_dimension_numbers<[1], [0], [0], [1], [0, 0, 1, 1], [], []>} : vector<8x128xf32>, vector<128x128xf32>, vector<8x128xf32> -> vector<8x128xf32>
    %c0_8 = arith.constant 0 : index
    %c0_9 = arith.constant 0 : index
    %8 = vector.load %arg5[%c0_8, %c0_9] : memref<1x128xf32, #tpu.memory_space<vmem>>, vector<1x128xf32>
    %9 = vector.broadcast %8 : vector<1x128xf32> to vector<8x128xf32>
    %10 = arith.addf %7, %9 : vector<8x128xf32>
    %cst_10 = arith.constant 0.000000e+00 : f32
    %11 = vector.broadcast %cst_10 : f32 to vector<8x128xf32>
    %12 = arith.cmpf ogt, %10, %11 : vector<8x128xf32>
    %cst_11 = arith.constant 0.00999999977 : f32
    %13 = vector.broadcast %cst_11 : f32 to vector<8x128xf32>
    %14 = arith.mulf %13, %10 : vector<8x128xf32>
    %15 = arith.select %12, %10, %14 : vector<8x128xi1>, vector<8x128xf32>
    %c0_12 = arith.constant 0 : index
    %c0_13 = arith.constant 0 : index
    %16 = vector.load %arg6[%c0_12, %c0_13] : memref<128x128xf32, #tpu.memory_space<vmem>>, vector<128x128xf32>
    %cst_14 = arith.constant dense<0.000000e+00> : vector<8x128xf32>
    %17 = tpu.matmul %15, %16, %cst_14 {dimension_numbers = #tpu.dot_dimension_numbers<[1], [0], [0], [1], [0, 0, 1, 1], [], []>} : vector<8x128xf32>, vector<128x128xf32>, vector<8x128xf32> -> vector<8x128xf32>
    %c0_15 = arith.constant 0 : index
    %c0_16 = arith.constant 0 : index
    %18 = vector.load %arg7[%c0_15, %c0_16] : memref<1x128xf32, #tpu.memory_space<vmem>>, vector<1x128xf32>
    %19 = vector.broadcast %18 : vector<1x128xf32> to vector<8x128xf32>
    %20 = arith.addf %17, %19 : vector<8x128xf32>
    %21 = arith.addf %20, %5 : vector<8x128xf32>
    %cst_17 = arith.constant 0.000000e+00 : f32
    %22 = vector.broadcast %cst_17 : f32 to vector<8x128xf32>
    %23 = arith.cmpf ogt, %21, %22 : vector<8x128xf32>
    %cst_18 = arith.constant 0.00999999977 : f32
    %24 = vector.broadcast %cst_18 : f32 to vector<8x128xf32>
    %25 = arith.mulf %24, %21 : vector<8x128xf32>
    %26 = arith.select %23, %21, %25 : vector<8x128xi1>, vector<8x128xf32>
    %c0_19 = arith.constant 0 : index
    %c0_20 = arith.constant 0 : index
    %27 = vector.load %arg8[%c0_19, %c0_20] : memref<128x128xf32, #tpu.memory_space<vmem>>, vector<128x128xf32>
    %cst_21 = arith.constant dense<0.000000e+00> : vector<8x128xf32>
    %28 = tpu.matmul %26, %27, %cst_21 {dimension_numbers = #tpu.dot_dimension_numbers<[1], [0], [0], [1], [0, 0, 1, 1], [], []>} : vector<8x128xf32>, vector<128x128xf32>, vector<8x128xf32> -> vector<8x128xf32>
    %c0_22 = arith.constant 0 : index
    %c0_23 = arith.constant 0 : index
    %29 = vector.load %arg9[%c0_22, %c0_23] : memref<1x128xf32, #tpu.memory_space<vmem>>, vector<1x128xf32>
    %30 = vector.broadcast %29 : vector<1x128xf32> to vector<8x128xf32>
    %31 = arith.addf %28, %30 : vector<8x128xf32>
    %cst_24 = arith.constant 0.000000e+00 : f32
    %32 = vector.broadcast %cst_24 : f32 to vector<8x128xf32>
    %33 = arith.cmpf ogt, %31, %32 : vector<8x128xf32>
    %cst_25 = arith.constant 0.00999999977 : f32
    %34 = vector.broadcast %cst_25 : f32 to vector<8x128xf32>
    %35 = arith.mulf %34, %31 : vector<8x128xf32>
    %36 = arith.select %33, %31, %35 : vector<8x128xi1>, vector<8x128xf32>
    %c0_26 = arith.constant 0 : index
    %c0_27 = arith.constant 0 : index
    %37 = vector.load %arg10[%c0_26, %c0_27] : memref<128x128xf32, #tpu.memory_space<vmem>>, vector<128x128xf32>
    %cst_28 = arith.constant dense<0.000000e+00> : vector<8x128xf32>
    %38 = tpu.matmul %36, %37, %cst_28 {dimension_numbers = #tpu.dot_dimension_numbers<[1], [0], [0], [1], [0, 0, 1, 1], [], []>} : vector<8x128xf32>, vector<128x128xf32>, vector<8x128xf32> -> vector<8x128xf32>
    %c0_29 = arith.constant 0 : index
    %c0_30 = arith.constant 0 : index
    %39 = vector.load %arg11[%c0_29, %c0_30] : memref<1x128xf32, #tpu.memory_space<vmem>>, vector<1x128xf32>
    %40 = vector.broadcast %39 : vector<1x128xf32> to vector<8x128xf32>
    %41 = arith.addf %38, %40 : vector<8x128xf32>
    %c0_31 = arith.constant 0 : index
    %c0_32 = arith.constant 0 : index
    %42 = vector.load %arg12[%c0_31, %c0_32] : memref<128x128xf32, #tpu.memory_space<vmem>>, vector<128x128xf32>
    %cst_33 = arith.constant dense<0.000000e+00> : vector<8x128xf32>
    %43 = tpu.matmul %26, %42, %cst_33 {dimension_numbers = #tpu.dot_dimension_numbers<[1], [0], [0], [1], [0, 0, 1, 1], [], []>} : vector<8x128xf32>, vector<128x128xf32>, vector<8x128xf32> -> vector<8x128xf32>
    %c0_34 = arith.constant 0 : index
    %c0_35 = arith.constant 0 : index
    %44 = vector.load %arg13[%c0_34, %c0_35] : memref<1x128xf32, #tpu.memory_space<vmem>>, vector<1x128xf32>
    %45 = vector.broadcast %44 : vector<1x128xf32> to vector<8x128xf32>
    %46 = arith.addf %43, %45 : vector<8x128xf32>
    %47 = arith.addf %41, %46 : vector<8x128xf32>
    %cst_36 = arith.constant 0.000000e+00 : f32
    %48 = vector.broadcast %cst_36 : f32 to vector<8x128xf32>
    %49 = arith.cmpf ogt, %47, %48 : vector<8x128xf32>
    %cst_37 = arith.constant 0.00999999977 : f32
    %50 = vector.broadcast %cst_37 : f32 to vector<8x128xf32>
    %51 = arith.mulf %50, %47 : vector<8x128xf32>
    %52 = arith.select %49, %47, %51 : vector<8x128xi1>, vector<8x128xf32>
    %c0_38 = arith.constant 0 : index
    %c0_39 = arith.constant 0 : index
    %53 = vector.load %arg14[%c0_38, %c0_39] : memref<8x128xf32, #tpu.memory_space<vmem>>, vector<8x128xf32>
    tpu.vector_store %arg14[%c0_38, %c0_39], %52 {strides = array<i32>} : memref<8x128xf32, #tpu.memory_space<vmem>>, vector<8x128xf32>,
    return
  }
  func.func @transform_0(%arg0: i32) -> (i32, i32) {
    %c0_i32 = arith.constant 0 : i32
    %c0_i32_0 = arith.constant 0 : i32
    return %arg0, %c0_i32 : i32, i32
  }
  func.func @transform_1(%arg0: i32) -> (i32, i32) {
    %c0_i32 = arith.constant 0 : i32
    %c0_i32_0 = arith.constant 0 : i32
    %c0_i32_1 = arith.constant 0 : i32
    return %c0_i32, %c0_i32_0 : i32, i32
  }
  func.func @transform_2(%arg0: i32) -> (i32, i32) {
    %c0_i32 = arith.constant 0 : i32
    %c0_i32_0 = arith.constant 0 : i32
    %c0_i32_1 = arith.constant 0 : i32
    return %c0_i32, %c0_i32_0 : i32, i32
  }
  func.func @transform_3(%arg0: i32) -> (i32, i32) {
    %c0_i32 = arith.constant 0 : i32
    %c0_i32_0 = arith.constant 0 : i32
    %c0_i32_1 = arith.constant 0 : i32
    return %c0_i32, %c0_i32_0 : i32, i32
  }
  func.func @transform_4(%arg0: i32) -> (i32, i32) {
    %c0_i32 = arith.constant 0 : i32
    %c0_i32_0 = arith.constant 0 : i32
    %c0_i32_1 = arith.constant 0 : i32
    return %c0_i32, %c0_i32_0 : i32, i32
  }
  func.func @transform_5(%arg0: i32) -> (i32, i32) {
    %c0_i32 = arith.constant 0 : i32
    %c0_i32_0 = arith.constant 0 : i32
    %c0_i32_1 = arith.constant 0 : i32
    return %c0_i32, %c0_i32_0 : i32, i32
  }
  func.func @transform_6(%arg0: i32) -> (i32, i32) {
    %c0_i32 = arith.constant 0 : i32
    %c0_i32_0 = arith.constant 0 : i32
    %c0_i32_1 = arith.constant 0 : i32
    return %c0_i32, %c0_i32_0 : i32, i32
  }
  func.func @transform_7(%arg0: i32) -> (i32, i32) {
    %c0_i32 = arith.constant 0 : i32
    %c0_i32_0 = arith.constant 0 : i32
    %c0_i32_1 = arith.constant 0 : i32
    return %c0_i32, %c0_i32_0 : i32, i32
  }
  func.func @transform_8(%arg0: i32) -> (i32, i32) {
    %c0_i32 = arith.constant 0 : i32
    %c0_i32_0 = arith.constant 0 : i32
    %c0_i32_1 = arith.constant 0 : i32
    return %c0_i32, %c0_i32_0 : i32, i32
  }
  func.func @transform_9(%arg0: i32) -> (i32, i32) {
    %c0_i32 = arith.constant 0 : i32
    %c0_i32_0 = arith.constant 0 : i32
    %c0_i32_1 = arith.constant 0 : i32
    return %c0_i32, %c0_i32_0 : i32, i32
  }
  func.func @transform_10(%arg0: i32) -> (i32, i32) {
    %c0_i32 = arith.constant 0 : i32
    %c0_i32_0 = arith.constant 0 : i32
    %c0_i32_1 = arith.constant 0 : i32
    return %c0_i32, %c0_i32_0 : i32, i32
  }
  func.func @transform_11(%arg0: i32) -> (i32, i32) {
    %c0_i32 = arith.constant 0 : i32
    %c0_i32_0 = arith.constant 0 : i32
    %c0_i32_1 = arith.constant 0 : i32
    return %c0_i32, %c0_i32_0 : i32, i32
  }
  func.func @transform_12(%arg0: i32) -> (i32, i32) {
    %c0_i32 = arith.constant 0 : i32
    %c0_i32_0 = arith.constant 0 : i32
    %c0_i32_1 = arith.constant 0 : i32
    return %c0_i32, %c0_i32_0 : i32, i32
  }
  func.func @transform_13(%arg0: i32) -> (i32, i32) {
    %c0_i32 = arith.constant 0 : i32
    %c0_i32_0 = arith.constant 0 : i32
    return %arg0, %c0_i32 : i32, i32
  }
}

module attributes {stable_mosaic.version = 11 : i64} {
  func.func @kernel(%arg0: i32, %arg1: memref<8x128xf32, #tpu.memory_space<vmem>>, %arg2: memref<128x128xf32, #tpu.memory_space<vmem>>, %arg3: memref<1x128xf32, #tpu.memory_space<vmem>>, %arg4: memref<128x128xf32, #tpu.memory_space<vmem>>, %arg5: memref<1x128xf32, #tpu.memory_space<vmem>>, %arg6: memref<128x128xf32, #tpu.memory_space<vmem>>, %arg7: memref<1x128xf32, #tpu.memory_space<vmem>>, %arg8: memref<128x128xf32, #tpu.memory_space<vmem>>, %arg9: memref<1x128xf32, #tpu.memory_space<vmem>>, %arg10: memref<128x128xf32, #tpu.memory_space<vmem>>, %arg11: memref<1x128xf32, #tpu.memory_space<vmem>>, %arg12: memref<128x128xf32, #tpu.memory_space<vmem>>, %arg13: memref<1x128xf32, #tpu.memory_space<vmem>>, %arg14: memref<8x128xf32, #tpu.memory_space<vmem>>) attributes {dimension_semantics = [#tpu.dimension_semantics<parallel>], iteration_bounds = array<i64: 1>, scalar_prefetch = 0 : i64, scratch_operands = 0 : i64, tpu.core_type = #tpu.core_type<tc>, window_params = [{transform_indices = @transform_0, window_bounds = array<i64: 8, 128>}, {pipeline_mode = #tpu.pipeline_mode<synchronous>, transform_indices = @transform_1, window_bounds = array<i64: 128, 128>}, {pipeline_mode = #tpu.pipeline_mode<synchronous>, transform_indices = @transform_2, window_bounds = array<i64: 1, 128>}, {pipeline_mode = #tpu.pipeline_mode<synchronous>, transform_indices = @transform_3, window_bounds = array<i64: 128, 128>}, {pipeline_mode = #tpu.pipeline_mode<synchronous>, transform_indices = @transform_4, window_bounds = array<i64: 1, 128>}, {pipeline_mode = #tpu.pipeline_mode<synchronous>, transform_indices = @transform_5, window_bounds = array<i64: 128, 128>}, {pipeline_mode = #tpu.pipeline_mode<synchronous>, transform_indices = @transform_6, window_bounds = array<i64: 1, 128>}, {pipeline_mode = #tpu.pipeline_mode<synchronous>, transform_indices = @transform_7, window_bounds = array<i64: 128, 128>}, {pipeline_mode = #tpu.pipeline_mode<synchronous>, transform_indices = @transform_8, window_bounds = array<i64: 1, 128>}, {pipeline_mode = #tpu.pipeline_mode<synchronous>, transform_indices = @transform_9, window_bounds = array<i64: 128, 128>}, {pipeline_mode = #tpu.pipeline_mode<synchronous>, transform_indices = @transform_10, window_bounds = array<i64: 1, 128>}, {pipeline_mode = #tpu.pipeline_mode<synchronous>, transform_indices = @transform_11, window_bounds = array<i64: 128, 128>}, {pipeline_mode = #tpu.pipeline_mode<synchronous>, transform_indices = @transform_12, window_bounds = array<i64: 1, 128>}, {transform_indices = @transform_13, window_bounds = array<i64: 8, 128>}]} {
    %c0 = arith.constant 0 : index
    %c0_0 = arith.constant 0 : index
    %0 = vector.load %arg1[%c0, %c0_0] : memref<8x128xf32, #tpu.memory_space<vmem>>, vector<8x128xf32>
    %c0_1 = arith.constant 0 : index
    %c0_2 = arith.constant 0 : index
    %1 = vector.load %arg2[%c0_1, %c0_2] : memref<128x128xf32, #tpu.memory_space<vmem>>, vector<128x128xf32>
    %cst = arith.constant dense<0.000000e+00> : vector<8x128xf32>
    %2 = tpu.matmul %0, %1, %cst {dimension_numbers = #tpu.dot_dimension_numbers<[1], [0], [0], [1], [0, 0, 1, 1], [], []>} : vector<8x128xf32>, vector<128x128xf32>, vector<8x128xf32> -> vector<8x128xf32>
    %c0_3 = arith.constant 0 : index
    %c0_4 = arith.constant 0 : index
    %3 = vector.load %arg3[%c0_3, %c0_4] : memref<1x128xf32, #tpu.memory_space<vmem>>, vector<1x128xf32>
    %4 = vector.broadcast %3 : vector<1x128xf32> to vector<8x128xf32>
    %5 = arith.addf %2, %4 : vector<8x128xf32>
    %c0_5 = arith.constant 0 : index
    %c0_6 = arith.constant 0 : index
    %6 = vector.load %arg4[%c0_5, %c0_6] : memref<128x128xf32, #tpu.memory_space<vmem>>, vector<128x128xf32>
    %cst_7 = arith.constant dense<0.000000e+00> : vector<8x128xf32>
    %7 = tpu.matmul %5, %6, %cst_7 {dimension_numbers = #tpu.dot_dimension_numbers<[1], [0], [0], [1], [0, 0, 1, 1], [], []>} : vector<8x128xf32>, vector<128x128xf32>, vector<8x128xf32> -> vector<8x128xf32>
    %c0_8 = arith.constant 0 : index
    %c0_9 = arith.constant 0 : index
    %8 = vector.load %arg5[%c0_8, %c0_9] : memref<1x128xf32, #tpu.memory_space<vmem>>, vector<1x128xf32>
    %9 = vector.broadcast %8 : vector<1x128xf32> to vector<8x128xf32>
    %10 = arith.addf %7, %9 : vector<8x128xf32>
    %cst_10 = arith.constant 0.000000e+00 : f32
    %11 = vector.broadcast %cst_10 : f32 to vector<8x128xf32>
    %12 = arith.cmpf ogt, %10, %11 : vector<8x128xf32>
    %cst_11 = arith.constant 0.00999999977 : f32
    %13 = vector.broadcast %cst_11 : f32 to vector<8x128xf32>
    %14 = arith.mulf %13, %10 : vector<8x128xf32>
    %15 = arith.select %12, %10, %14 : vector<8x128xi1>, vector<8x128xf32>
    %c0_12 = arith.constant 0 : index
    %c0_13 = arith.constant 0 : index
    %16 = vector.load %arg6[%c0_12, %c0_13] : memref<128x128xf32, #tpu.memory_space<vmem>>, vector<128x128xf32>
    %cst_14 = arith.constant dense<0.000000e+00> : vector<8x128xf32>
    %17 = tpu.matmul %15, %16, %cst_14 {dimension_numbers = #tpu.dot_dimension_numbers<[1], [0], [0], [1], [0, 0, 1, 1], [], []>} : vector<8x128xf32>, vector<128x128xf32>, vector<8x128xf32> -> vector<8x128xf32>
    %c0_15 = arith.constant 0 : index
    %c0_16 = arith.constant 0 : index
    %18 = vector.load %arg7[%c0_15, %c0_16] : memref<1x128xf32, #tpu.memory_space<vmem>>, vector<1x128xf32>
    %19 = vector.broadcast %18 : vector<1x128xf32> to vector<8x128xf32>
    %20 = arith.addf %17, %19 : vector<8x128xf32>
    %21 = arith.addf %20, %5 : vector<8x128xf32>
    %cst_17 = arith.constant 0.000000e+00 : f32
    %22 = vector.broadcast %cst_17 : f32 to vector<8x128xf32>
    %23 = arith.cmpf ogt, %21, %22 : vector<8x128xf32>
    %cst_18 = arith.constant 0.00999999977 : f32
    %24 = vector.broadcast %cst_18 : f32 to vector<8x128xf32>
    %25 = arith.mulf %24, %21 : vector<8x128xf32>
    %26 = arith.select %23, %21, %25 : vector<8x128xi1>, vector<8x128xf32>
    %c0_19 = arith.constant 0 : index
    %c0_20 = arith.constant 0 : index
    %27 = vector.load %arg8[%c0_19, %c0_20] : memref<128x128xf32, #tpu.memory_space<vmem>>, vector<128x128xf32>
    %cst_21 = arith.constant dense<0.000000e+00> : vector<8x128xf32>
    %28 = tpu.matmul %26, %27, %cst_21 {dimension_numbers = #tpu.dot_dimension_numbers<[1], [0], [0], [1], [0, 0, 1, 1], [], []>} : vector<8x128xf32>, vector<128x128xf32>, vector<8x128xf32> -> vector<8x128xf32>
    %c0_22 = arith.constant 0 : index
    %c0_23 = arith.constant 0 : index
    %29 = vector.load %arg9[%c0_22, %c0_23] : memref<1x128xf32, #tpu.memory_space<vmem>>, vector<1x128xf32>
    %30 = vector.broadcast %29 : vector<1x128xf32> to vector<8x128xf32>
    %31 = arith.addf %28, %30 : vector<8x128xf32>
    %cst_24 = arith.constant 0.000000e+00 : f32
    %32 = vector.broadcast %cst_24 : f32 to vector<8x128xf32>
    %33 = arith.cmpf ogt, %31, %32 : vector<8x128xf32>
    %cst_25 = arith.constant 0.00999999977 : f32
    %34 = vector.broadcast %cst_25 : f32 to vector<8x128xf32>
    %35 = arith.mulf %34, %31 : vector<8x128xf32>
    %36 = arith.select %33, %31, %35 : vector<8x128xi1>, vector<8x128xf32>
    %c0_26 = arith.constant 0 : index
    %c0_27 = arith.constant 0 : index
    %37 = vector.load %arg10[%c0_26, %c0_27] : memref<128x128xf32, #tpu.memory_space<vmem>>, vector<128x128xf32>
    %cst_28 = arith.constant dense<0.000000e+00> : vector<8x128xf32>
    %38 = tpu.matmul %36, %37, %cst_28 {dimension_numbers = #tpu.dot_dimension_numbers<[1], [0], [0], [1], [0, 0, 1, 1], [], []>} : vector<8x128xf32>, vector<128x128xf32>, vector<8x128xf32> -> vector<8x128xf32>
    %c0_29 = arith.constant 0 : index
    %c0_30 = arith.constant 0 : index
    %39 = vector.load %arg11[%c0_29, %c0_30] : memref<1x128xf32, #tpu.memory_space<vmem>>, vector<1x128xf32>
    %40 = vector.broadcast %39 : vector<1x128xf32> to vector<8x128xf32>
    %41 = arith.addf %38, %40 : vector<8x128xf32>
    %c0_31 = arith.constant 0 : index
    %c0_32 = arith.constant 0 : index
    %42 = vector.load %arg12[%c0_31, %c0_32] : memref<128x128xf32, #tpu.memory_space<vmem>>, vector<128x128xf32>
    %cst_33 = arith.constant dense<0.000000e+00> : vector<8x128xf32>
    %43 = tpu.matmul %26, %42, %cst_33 {dimension_numbers = #tpu.dot_dimension_numbers<[1], [0], [0], [1], [0, 0, 1, 1], [], []>} : vector<8x128xf32>, vector<128x128xf32>, vector<8x128xf32> -> vector<8x128xf32>
    %c0_34 = arith.constant 0 : index
    %c0_35 = arith.constant 0 : index
    %44 = vector.load %arg13[%c0_34, %c0_35] : memref<1x128xf32, #tpu.memory_space<vmem>>, vector<1x128xf32>
    %45 = vector.broadcast %44 : vector<1x128xf32> to vector<8x128xf32>
    %46 = arith.addf %43, %45 : vector<8x128xf32>
    %47 = arith.addf %41, %46 : vector<8x128xf32>
    %cst_36 = arith.constant 0.000000e+00 : f32
    %48 = vector.broadcast %cst_36 : f32 to vector<8x128xf32>
    %49 = arith.cmpf ogt, %47, %48 : vector<8x128xf32>
    %cst_37 = arith.constant 0.00999999977 : f32
    %50 = vector.broadcast %cst_37 : f32 to vector<8x128xf32>
    %51 = arith.mulf %50, %47 : vector<8x128xf32>
    %52 = arith.select %49, %47, %51 : vector<8x128xi1>, vector<8x128xf32>
    %c0_38 = arith.constant 0 : index
    %c0_39 = arith.constant 0 : index
    %53 = vector.load %arg14[%c0_38, %c0_39] : memref<8x128xf32, #tpu.memory_space<vmem>>, vector<8x128xf32>
    tpu.vector_store %arg14[%c0_38, %c0_39], %52 {strides = array<i32>} : memref<8x128xf32, #tpu.memory_space<vmem>>, vector<8x128xf32>,
    return
  }
  func.func @transform_0(%arg0: i32) -> (i32, i32) {
    %c0_i32 = arith.constant 0 : i32
    %c0_i32_0 = arith.constant 0 : i32
    return %arg0, %c0_i32 : i32, i32
  }
  func.func @transform_1(%arg0: i32) -> (i32, i32) {
    %c0_i32 = arith.constant 0 : i32
    %c0_i32_0 = arith.constant 0 : i32
    %c0_i32_1 = arith.constant 0 : i32
    return %c0_i32, %c0_i32_0 : i32, i32
  }
  func.func @transform_2(%arg0: i32) -> (i32, i32) {
    %c0_i32 = arith.constant 0 : i32
    %c0_i32_0 = arith.constant 0 : i32
    %c0_i32_1 = arith.constant 0 : i32
    return %c0_i32, %c0_i32_0 : i32, i32
  }
  func.func @transform_3(%arg0: i32) -> (i32, i32) {
    %c0_i32 = arith.constant 0 : i32
    %c0_i32_0 = arith.constant 0 : i32
    %c0_i32_1 = arith.constant 0 : i32
    return %c0_i32, %c0_i32_0 : i32, i32
  }
  func.func @transform_4(%arg0: i32) -> (i32, i32) {
    %c0_i32 = arith.constant 0 : i32
    %c0_i32_0 = arith.constant 0 : i32
    %c0_i32_1 = arith.constant 0 : i32
    return %c0_i32, %c0_i32_0 : i32, i32
  }
  func.func @transform_5(%arg0: i32) -> (i32, i32) {
    %c0_i32 = arith.constant 0 : i32
    %c0_i32_0 = arith.constant 0 : i32
    %c0_i32_1 = arith.constant 0 : i32
    return %c0_i32, %c0_i32_0 : i32, i32
  }
  func.func @transform_6(%arg0: i32) -> (i32, i32) {
    %c0_i32 = arith.constant 0 : i32
    %c0_i32_0 = arith.constant 0 : i32
    %c0_i32_1 = arith.constant 0 : i32
    return %c0_i32, %c0_i32_0 : i32, i32
  }
  func.func @transform_7(%arg0: i32) -> (i32, i32) {
    %c0_i32 = arith.constant 0 : i32
    %c0_i32_0 = arith.constant 0 : i32
    %c0_i32_1 = arith.constant 0 : i32
    return %c0_i32, %c0_i32_0 : i32, i32
  }
  func.func @transform_8(%arg0: i32) -> (i32, i32) {
    %c0_i32 = arith.constant 0 : i32
    %c0_i32_0 = arith.constant 0 : i32
    %c0_i32_1 = arith.constant 0 : i32
    return %c0_i32, %c0_i32_0 : i32, i32
  }
  func.func @transform_9(%arg0: i32) -> (i32, i32) {
    %c0_i32 = arith.constant 0 : i32
    %c0_i32_0 = arith.constant 0 : i32
    %c0_i32_1 = arith.constant 0 : i32
    return %c0_i32, %c0_i32_0 : i32, i32
  }
  func.func @transform_10(%arg0: i32) -> (i32, i32) {
    %c0_i32 = arith.constant 0 : i32
    %c0_i32_0 = arith.constant 0 : i32
    %c0_i32_1 = arith.constant 0 : i32
    return %c0_i32, %c0_i32_0 : i32, i32
  }
  func.func @transform_11(%arg0: i32) -> (i32, i32) {
    %c0_i32 = arith.constant 0 : i32
    %c0_i32_0 = arith.constant 0 : i32
    %c0_i32_1 = arith.constant 0 : i32
    return %c0_i32, %c0_i32_0 : i32, i32
  }
  func.func @transform_12(%arg0: i32) -> (i32, i32) {
    %c0_i32 = arith.constant 0 : i32
    %c0_i32_0 = arith.constant 0 : i32
    %c0_i32_1 = arith.constant 0 : i32
    return %c0_i32, %c0_i32_0 : i32, i32
  }
  func.func @transform_13(%arg0: i32) -> (i32, i32) {
    %c0_i32 = arith.constant 0 : i32
    %c0_i32_0 = arith.constant 0 : i32
    return %arg0, %c0_i32 : i32, i32
  }
}

</mosaic_0001>

<llo_original>
// kernel: tpu_custom_call.1
$region0: #{tpu_custom_call.1}
  #allocation0 [shape = 'u32[]', space=smem, size = 0x4, offset = 0x4, fixed_abs, tag = 'smem constant byte address 0x4 - core index']
  #allocation1 [shape = 'u32[144,128]{1,0:T(1,128)}', space=vmem, size = 0x12000, scoped, tag = 'internal scratch']
  %s0 = inlined_call_operand.hbm [shape: f32[8,128], index: 0, kind: input, shape index: {}]
  %s1 = inlined_call_operand.hbm [shape: f32[128,128], index: 1, kind: input, shape index: {}]
  %s2 = inlined_call_operand.vmem [shape: f32[1,128], index: 2, kind: input, shape index: {}]
  %s3 = inlined_call_operand.hbm [shape: f32[128,128], index: 3, kind: input, shape index: {}]
  %s4 = inlined_call_operand.vmem [shape: f32[1,128], index: 4, kind: input, shape index: {}]
  %s5 = inlined_call_operand.hbm [shape: f32[128,128], index: 5, kind: input, shape index: {}]
  %s6 = inlined_call_operand.vmem [shape: f32[1,128], index: 6, kind: input, shape index: {}]
  %s7 = inlined_call_operand.hbm [shape: f32[128,128], index: 7, kind: input, shape index: {}]
  %s8 = inlined_call_operand.vmem [shape: f32[1,128], index: 8, kind: input, shape index: {}]
  %s9 = inlined_call_operand.hbm [shape: f32[128,128], index: 9, kind: input, shape index: {}]
  %s10 = inlined_call_operand.vmem [shape: f32[1,128], index: 10, kind: input, shape index: {}]
  %s11 = inlined_call_operand.hbm [shape: f32[128,128], index: 11, kind: input, shape index: {}]
  %s12 = inlined_call_operand.vmem [shape: f32[1,128], index: 12, kind: input, shape index: {}]
  %s13 = inlined_call_operand.hbm [shape: f32[8,128], index: 13, kind: output, shape index: {}]
  %s14 = sld [smem:[#allocation0]]
  $region90: #{tpu_custom_call.1} parent=0
    _
  %s16 = ssub.s32 1, %s14
  %s17 = scalar_select 0, %s16, %s14
  $region1: #{tpu_custom_call.1} parent=0
    #allocation2 [shape = 'u8[4096]{0}', space=vmem, size = 0x1000, scoped, tag = 'input window, operand 0, single buffered']
    #allocation3 [shape = 's32[1]{0}', space=sflag, size = 0x4, scoped, tag = 'scoped memory for tpu_custom_call.1']
    #allocation4 [shape = 's32[1]{0}', space=sflag, size = 0x4, scoped, tag = 'scoped memory for tpu_custom_call.1']
    #allocation5 [shape = 'u8[65536]{0}', space=vmem, size = 0x10000, scoped, tag = 'input window, operand 1, single buffered']
    #allocation6 [shape = 's32[1]{0}', space=sflag, size = 0x4, scoped, tag = 'scoped memory for tpu_custom_call.1']
    #allocation7 [shape = 'u8[65536]{0}', space=vmem, size = 0x10000, scoped, tag = 'input window, operand 3, single buffered']
    #allocation8 [shape = 'u8[65536]{0}', space=vmem, size = 0x10000, scoped, tag = 'input window, operand 5, single buffered']
    #allocation9 [shape = 's32[1]{0}', space=sflag, size = 0x4, scoped, tag = 'scoped memory for tpu_custom_call.1']
    #allocation10 [shape = 'u8[65536]{0}', space=vmem, size = 0x10000, scoped, tag = 'input window, operand 7, single buffered']
    #allocation11 [shape = 'u8[65536]{0}', space=vmem, size = 0x10000, scoped, tag = 'input window, operand 9, single buffered']
    #allocation12 [shape = 's32[1]{0}', space=sflag, size = 0x4, scoped, tag = 'scoped memory for tpu_custom_call.1']
    #allocation13 [shape = 'u8[65536]{0}', space=vmem, size = 0x10000, scoped, tag = 'input window, operand 11, single buffered']
    #allocation14 [shape = 'u8[4096]{0}', space=vmem, size = 0x1000, scoped, tag = 'output window, operand 0, single buffered']
    %18 = vsyncpa [#allocation3], 0
    %19 = vsyncpa [#allocation6], 0
    %20 = vsyncpa [#allocation9], 0
    %21 = vsyncpa [#allocation12], 0
    %22 = vsyncpa [#allocation4], 0
    // Predicated region
    $region2: #{tpu_custom_call.1} parent=1 // pred_check
      _
    $region3: #{tpu_custom_call.1} parent=1 // pred_check_branch
      %24 = sbr.rel (0) target = $region5
    $region4: #{tpu_custom_call.1} parent=1 // pred_region
      %s26 = ssub.s32 128, 128
      %27 = vsyncadd [#allocation3], %s26
      %s29 = sshll.u32 [#allocation2], 4
      %s30 = int_to_ptr.vmem [resolvable:$true] %s29
      %32 = dma.hbm_to_vmem [thread:$0]  %s0, 128, %s30, [#allocation3]
    $region5: #{tpu_custom_call.1} parent=1 // pred_fallthru
      _
    // Predicated region
    $region6: #{tpu_custom_call.1} parent=1 // pred_check
      _
    $region7: #{tpu_custom_call.1} parent=1 // pred_check_branch
      %34 = sbr.rel (0) target = $region9
    $region8: #{tpu_custom_call.1} parent=1 // pred_region
      %s36 = ssub.s32 2048, 2048
      %37 = vsyncadd [#allocation6], %s36
      %s38 = sshll.u32 [#allocation5], 4
      %s39 = int_to_ptr.vmem [resolvable:$true] %s38
      %44 = dma.hbm_to_vmem [thread:$0]  %s1, 2048, %s39, [#allocation6], 128, 128, 8
    $region9: #{tpu_custom_call.1} parent=1 // pred_fallthru
      _
    // Predicated region
    $region10: #{tpu_custom_call.1} parent=1 // pred_check
      _
    $region11: #{tpu_custom_call.1} parent=1 // pred_check_branch
      %46 = sbr.rel (0) target = $region13
    $region12: #{tpu_custom_call.1} parent=1 // pred_region
      _
    $region13: #{tpu_custom_call.1} parent=1 // pred_fallthru
      _
    // Predicated region
    $region14: #{tpu_custom_call.1} parent=1 // pred_check
      _
    $region15: #{tpu_custom_call.1} parent=1 // pred_check_branch
      %48 = sbr.rel (0) target = $region17
    $region16: #{tpu_custom_call.1} parent=1 // pred_region
      %s50 = ssub.s32 2048, 2048
      %51 = vsyncadd [#allocation6], %s50
      %s52 = sshll.u32 [#allocation7], 4
      %s53 = int_to_ptr.vmem [resolvable:$true] %s52
      %58 = dma.hbm_to_vmem [thread:$0]  %s3, 2048, %s53, [#allocation6], 128, 128, 8
    $region17: #{tpu_custom_call.1} parent=1 // pred_fallthru
      _
    // Predicated region
    $region18: #{tpu_custom_call.1} parent=1 // pred_check
      _
    $region19: #{tpu_custom_call.1} parent=1 // pred_check_branch
      %60 = sbr.rel (0) target = $region21
    $region20: #{tpu_custom_call.1} parent=1 // pred_region
      _
    $region21: #{tpu_custom_call.1} parent=1 // pred_fallthru
      _
    // Predicated region
    $region22: #{tpu_custom_call.1} parent=1 // pred_check
      _
    $region23: #{tpu_custom_call.1} parent=1 // pred_check_branch
      %62 = sbr.rel (0) target = $region25
    $region24: #{tpu_custom_call.1} parent=1 // pred_region
      %s64 = ssub.s32 2048, 2048
      %65 = vsyncadd [#allocation9], %s64
      %s66 = sshll.u32 [#allocation8], 4
      %s67 = int_to_ptr.vmem [resolvable:$true] %s66
      %72 = dma.hbm_to_vmem [thread:$0]  %s5, 2048, %s67, [#allocation9], 128, 128, 8
    $region25: #{tpu_custom_call.1} parent=1 // pred_fallthru
      _
    // Predicated region
    $region26: #{tpu_custom_call.1} parent=1 // pred_check
      _
    $region27: #{tpu_custom_call.1} parent=1 // pred_check_branch
      %74 = sbr.rel (0) target = $region29
    $region28: #{tpu_custom_call.1} parent=1 // pred_region
      _
    $region29: #{tpu_custom_call.1} parent=1 // pred_fallthru
      _
    // Predicated region
    $region30: #{tpu_custom_call.1} parent=1 // pred_check
      _
    $region31: #{tpu_custom_call.1} parent=1 // pred_check_branch
      %76 = sbr.rel (0) target = $region33
    $region32: #{tpu_custom_call.1} parent=1 // pred_region
      %s78 = ssub.s32 2048, 2048
      %79 = vsyncadd [#allocation9], %s78
      %s80 = sshll.u32 [#allocation10], 4
      %s81 = int_to_ptr.vmem [resolvable:$true] %s80
      %86 = dma.hbm_to_vmem [thread:$0]  %s7, 2048, %s81, [#allocation9], 128, 128, 8
    $region33: #{tpu_custom_call.1} parent=1 // pred_fallthru
      _
    // Predicated region
    $region34: #{tpu_custom_call.1} parent=1 // pred_check
      _
    $region35: #{tpu_custom_call.1} parent=1 // pred_check_branch
      %88 = sbr.rel (0) target = $region37
    $region36: #{tpu_custom_call.1} parent=1 // pred_region
      _
    $region37: #{tpu_custom_call.1} parent=1 // pred_fallthru
      _
    // Predicated region
    $region38: #{tpu_custom_call.1} parent=1 // pred_check
      _
    $region39: #{tpu_custom_call.1} parent=1 // pred_check_branch
      %90 = sbr.rel (0) target = $region41
    $region40: #{tpu_custom_call.1} parent=1 // pred_region
      %s92 = ssub.s32 2048, 2048
      %93 = vsyncadd [#allocation12], %s92
      %s94 = sshll.u32 [#allocation11], 4
      %s95 = int_to_ptr.vmem [resolvable:$true] %s94
      %100 = dma.hbm_to_vmem [thread:$0]  %s9, 2048, %s95, [#allocation12], 128, 128, 8
    $region41: #{tpu_custom_call.1} parent=1 // pred_fallthru
      _
    // Predicated region
    $region42: #{tpu_custom_call.1} parent=1 // pred_check
      _
    $region43: #{tpu_custom_call.1} parent=1 // pred_check_branch
      %102 = sbr.rel (0) target = $region45
    $region44: #{tpu_custom_call.1} parent=1 // pred_region
      _
    $region45: #{tpu_custom_call.1} parent=1 // pred_fallthru
      _
    // Predicated region
    $region46: #{tpu_custom_call.1} parent=1 // pred_check
      _
    $region47: #{tpu_custom_call.1} parent=1 // pred_check_branch
      %104 = sbr.rel (0) target = $region49
    $region48: #{tpu_custom_call.1} parent=1 // pred_region
      %s106 = ssub.s32 2048, 2048
      %107 = vsyncadd [#allocation12], %s106
      %s108 = sshll.u32 [#allocation13], 4
      %s109 = int_to_ptr.vmem [resolvable:$true] %s108
      %114 = dma.hbm_to_vmem [thread:$0]  %s11, 2048, %s109, [#allocation12], 128, 128, 8
    $region49: #{tpu_custom_call.1} parent=1 // pred_fallthru
      _
    // Predicated region
    $region50: #{tpu_custom_call.1} parent=1 // pred_check
      _
    $region51: #{tpu_custom_call.1} parent=1 // pred_check_branch
      %116 = sbr.rel (0) target = $region53
    $region52: #{tpu_custom_call.1} parent=1 // pred_region
      _
    $region53: #{tpu_custom_call.1} parent=1 // pred_fallthru
      _
    // Predicated region
    $region54: #{tpu_custom_call.1} parent=1 // pred_check
      _
    $region55: #{tpu_custom_call.1} parent=1 // pred_check_branch
      %118 = sbr.rel (0) target = $region57
    $region56: #{tpu_custom_call.1} parent=1 // pred_region
      %119 = dma.done [#allocation3], 128
    $region57: #{tpu_custom_call.1} parent=1 // pred_fallthru
      _
    // Predicated region
    $region58: #{tpu_custom_call.1} parent=1 // pred_check
      _
    $region59: #{tpu_custom_call.1} parent=1 // pred_check_branch
      %121 = sbr.rel (0) target = $region61
    $region60: #{tpu_custom_call.1} parent=1 // pred_region
      %122 = dma.done [#allocation6], 2048
    $region61: #{tpu_custom_call.1} parent=1 // pred_fallthru
      _
    // Predicated region
    $region62: #{tpu_custom_call.1} parent=1 // pred_check
      _
    $region63: #{tpu_custom_call.1} parent=1 // pred_check_branch
      %124 = sbr.rel (0) target = $region65
    $region64: #{tpu_custom_call.1} parent=1 // pred_region
      %125 = dma.done [#allocation6], 2048
    $region65: #{tpu_custom_call.1} parent=1 // pred_fallthru
      _
    // Predicated region
    $region66: #{tpu_custom_call.1} parent=1 // pred_check
      _
    $region67: #{tpu_custom_call.1} parent=1 // pred_check_branch
      %127 = sbr.rel (0) target = $region69
    $region68: #{tpu_custom_call.1} parent=1 // pred_region
      %128 = dma.done [#allocation9], 2048
    $region69: #{tpu_custom_call.1} parent=1 // pred_fallthru
      _
    // Predicated region
    $region70: #{tpu_custom_call.1} parent=1 // pred_check
      _
    $region71: #{tpu_custom_call.1} parent=1 // pred_check_branch
      %130 = sbr.rel (0) target = $region73
    $region72: #{tpu_custom_call.1} parent=1 // pred_region
      %131 = dma.done [#allocation9], 2048
    $region73: #{tpu_custom_call.1} parent=1 // pred_fallthru
      _
    // Predicated region
    $region74: #{tpu_custom_call.1} parent=1 // pred_check
      _
    $region75: #{tpu_custom_call.1} parent=1 // pred_check_branch
      %133 = sbr.rel (0) target = $region77
    $region76: #{tpu_custom_call.1} parent=1 // pred_region
      %134 = dma.done [#allocation12], 2048
    $region77: #{tpu_custom_call.1} parent=1 // pred_fallthru
      _
    // Predicated region
    $region78: #{tpu_custom_call.1} parent=1 // pred_check
      _
    $region79: #{tpu_custom_call.1} parent=1 // pred_check_branch
      %136 = sbr.rel (0) target = $region81
    $region80: #{tpu_custom_call.1} parent=1 // pred_region
      %137 = dma.done [#allocation12], 2048
    $region81: #{tpu_custom_call.1} parent=1 // pred_fallthru
      _
    %v138 = vld [vmem:[#allocation2] sm:$0xff]
    %v139 = vld [vmem:[#allocation5] sm:$0xff]
    %v140 = vld [vmem:[#allocation5 + $0x8] sm:$0xff]
    %v141 = vld [vmem:[#allocation5 + $0x10] sm:$0xff]
    %v142 = vld [vmem:[#allocation5 + $0x18] sm:$0xff]
    %v143 = vld [vmem:[#allocation5 + $0x20] sm:$0xff]
    %v144 = vld [vmem:[#allocation5 + $0x28] sm:$0xff]
    %v145 = vld [vmem:[#allocation5 + $0x30] sm:$0xff]
    %v146 = vld [vmem:[#allocation5 + $0x38] sm:$0xff]
    %v147 = vld [vmem:[#allocation5 + $0x40] sm:$0xff]
    %v148 = vld [vmem:[#allocation5 + $0x48] sm:$0xff]
    %v149 = vld [vmem:[#allocation5 + $0x50] sm:$0xff]
    %v150 = vld [vmem:[#allocation5 + $0x58] sm:$0xff]
    %v151 = vld [vmem:[#allocation5 + $0x60] sm:$0xff]
    %v152 = vld [vmem:[#allocation5 + $0x68] sm:$0xff]
    %v153 = vld [vmem:[#allocation5 + $0x70] sm:$0xff]
    %v154 = vld [vmem:[#allocation5 + $0x78] sm:$0xff]
    %v155 = vld [vmem:[%s2] sm:$0x1]
    %v157 = vlaneseq
    %v158 = vshrl.u32 %v157, 7
    %v159 = vsub.s32 0, %v158
    %v160 = vrot.slane %v155, %v159
    %162 = vmatprep.subr.mxu0 0.0
    %163 = vmatpush1.msra.mxu0 %v154
    %164 = vmatprep.subr.mxu0 0.0
    %165 = vmatpush1.msra.mxu0 %v153
    %166 = vmatprep.subr.mxu0 0.0
    %167 = vmatpush1.msra.mxu0 %v152
    %168 = vmatprep.subr.mxu0 0.0
    %169 = vmatpush1.msra.mxu0 %v151
    %170 = vmatprep.subr.mxu0 0.0
    %171 = vmatpush1.msra.mxu0 %v150
    %172 = vmatprep.subr.mxu0 0.0
    %173 = vmatpush1.msra.mxu0 %v149
    %174 = vmatprep.subr.mxu0 0.0
    %175 = vmatpush1.msra.mxu0 %v148
    %176 = vmatprep.subr.mxu0 0.0
    %177 = vmatpush1.msra.mxu0 %v147
    %178 = vmatprep.subr.mxu0 0.0
    %179 = vmatpush1.msra.mxu0 %v146
    %180 = vmatprep.subr.mxu0 0.0
    %181 = vmatpush1.msra.mxu0 %v145
    %182 = vmatprep.subr.mxu0 0.0
    %183 = vmatpush1.msra.mxu0 %v144
    %184 = vmatprep.subr.mxu0 0.0
    %185 = vmatpush1.msra.mxu0 %v143
    %186 = vmatprep.subr.mxu0 0.0
    %187 = vmatpush1.msra.mxu0 %v142
    %188 = vmatprep.subr.mxu0 0.0
    %189 = vmatpush1.msra.mxu0 %v141
    %190 = vmatprep.subr.mxu0 0.0
    %191 = vmatpush1.msra.mxu0 %v140
    %192 = vmatprep.subr.mxu0 0.0
    %193 = vmatpush1.msra.mxu0 %v139
    %194 = vmatprep.subr.mxu0 0.0
    %195 = vmatpush2.msra.mxu0 0.0
    %196 = vmatprep.subr.mxu0 0.0
    %197 = vmatpush2.msra.mxu0 0.0
    %198 = vmatprep.subr.mxu0 0.0
    %199 = vmatpush2.msra.mxu0 0.0
    %200 = vmatprep.subr.mxu0 0.0
    %201 = vmatpush2.msra.mxu0 0.0
    %202 = vmatprep.subr.mxu0 0.0
    %203 = vmatpush2.msra.mxu0 0.0
    %204 = vmatprep.subr.mxu0 0.0
    %205 = vmatpush2.msra.mxu0 0.0
    %206 = vmatprep.subr.mxu0 0.0
    %207 = vmatpush2.msra.mxu0 0.0
    %208 = vmatprep.subr.mxu0 0.0
    %209 = vmatpush2.msra.mxu0 0.0
    %210 = vmatprep.subr.mxu0 0.0
    %211 = vmatpush2.msra.mxu0 0.0
    %212 = vmatprep.subr.mxu0 0.0
    %213 = vmatpush2.msra.mxu0 0.0
    %214 = vmatprep.subr.mxu0 0.0
    %215 = vmatpush2.msra.mxu0 0.0
    %216 = vmatprep.subr.mxu0 0.0
    %217 = vmatpush2.msra.mxu0 0.0
    %218 = vmatprep.subr.mxu0 0.0
    %219 = vmatpush2.msra.mxu0 0.0
    %220 = vmatprep.subr.mxu0 0.0
    %221 = vmatpush2.msra.mxu0 0.0
    %222 = vmatprep.subr.mxu0 0.0
    %223 = vmatpush2.msra.mxu0 0.0
    %224 = vmatprep.subr.mxu0 0.0
    %225 = vmatpush2.msra.mxu0 0.0
    %226 = vmatprep.mubr.f32.mxu0 0.0
    %227 = vmatmul.mubr.f32.gmra.mxu0 %v138
    %v228 = vpop.f32.mrf.mxu0
    %v229 = vadd.f32 %v160, %v228
    %v230 = vpop.f32.mrf.mxu0
    %231 = vdwg.mxu0
    %v232 = vld [vmem:[#allocation7] sm:$0xff]
    %v233 = vld [vmem:[#allocation7 + $0x8] sm:$0xff]
    %v234 = vld [vmem:[#allocation7 + $0x10] sm:$0xff]
    %v235 = vld [vmem:[#allocation7 + $0x18] sm:$0xff]
    %v236 = vld [vmem:[#allocation7 + $0x20] sm:$0xff]
    %v237 = vld [vmem:[#allocation7 + $0x28] sm:$0xff]
    %v238 = vld [vmem:[#allocation7 + $0x30] sm:$0xff]
    %v239 = vld [vmem:[#allocation7 + $0x38] sm:$0xff]
    %v240 = vld [vmem:[#allocation7 + $0x40] sm:$0xff]
    %v241 = vld [vmem:[#allocation7 + $0x48] sm:$0xff]
    %v242 = vld [vmem:[#allocation7 + $0x50] sm:$0xff]
    %v243 = vld [vmem:[#allocation7 + $0x58] sm:$0xff]
    %v244 = vld [vmem:[#allocation7 + $0x60] sm:$0xff]
    %v245 = vld [vmem:[#allocation7 + $0x68] sm:$0xff]
    %v246 = vld [vmem:[#allocation7 + $0x70] sm:$0xff]
    %v247 = vld [vmem:[#allocation7 + $0x78] sm:$0xff]
    %v248 = vld [vmem:[%s4] sm:$0x1]
    %v250 = vlaneseq
    %v251 = vshrl.u32 %v250, 7
    %v252 = vsub.s32 0, %v251
    %v253 = vrot.slane %v248, %v252
    %255 = vmatprep.subr.mxu0 0.0
    %256 = vmatpush1.msra.mxu0 %v247
    %257 = vmatprep.subr.mxu0 0.0
    %258 = vmatpush1.msra.mxu0 %v246
    %259 = vmatprep.subr.mxu0 0.0
    %260 = vmatpush1.msra.mxu0 %v245
    %261 = vmatprep.subr.mxu0 0.0
    %262 = vmatpush1.msra.mxu0 %v244
    %263 = vmatprep.subr.mxu0 0.0
    %264 = vmatpush1.msra.mxu0 %v243
    %265 = vmatprep.subr.mxu0 0.0
    %266 = vmatpush1.msra.mxu0 %v242
    %267 = vmatprep.subr.mxu0 0.0
    %268 = vmatpush1.msra.mxu0 %v241
    %269 = vmatprep.subr.mxu0 0.0
    %270 = vmatpush1.msra.mxu0 %v240
    %271 = vmatprep.subr.mxu0 0.0
    %272 = vmatpush1.msra.mxu0 %v239
    %273 = vmatprep.subr.mxu0 0.0
    %274 = vmatpush1.msra.mxu0 %v238
    %275 = vmatprep.subr.mxu0 0.0
    %276 = vmatpush1.msra.mxu0 %v237
    %277 = vmatprep.subr.mxu0 0.0
    %278 = vmatpush1.msra.mxu0 %v236
    %279 = vmatprep.subr.mxu0 0.0
    %280 = vmatpush1.msra.mxu0 %v235
    %281 = vmatprep.subr.mxu0 0.0
    %282 = vmatpush1.msra.mxu0 %v234
    %283 = vmatprep.subr.mxu0 0.0
    %284 = vmatpush1.msra.mxu0 %v233
    %285 = vmatprep.subr.mxu0 0.0
    %286 = vmatpush1.msra.mxu0 %v232
    %287 = vmatprep.subr.mxu0 0.0
    %288 = vmatpush2.msra.mxu0 0.0
    %289 = vmatprep.subr.mxu0 0.0
    %290 = vmatpush2.msra.mxu0 0.0
    %291 = vmatprep.subr.mxu0 0.0
    %292 = vmatpush2.msra.mxu0 0.0
    %293 = vmatprep.subr.mxu0 0.0
    %294 = vmatpush2.msra.mxu0 0.0
    %295 = vmatprep.subr.mxu0 0.0
    %296 = vmatpush2.msra.mxu0 0.0
    %297 = vmatprep.subr.mxu0 0.0
    %298 = vmatpush2.msra.mxu0 0.0
    %299 = vmatprep.subr.mxu0 0.0
    %300 = vmatpush2.msra.mxu0 0.0
    %301 = vmatprep.subr.mxu0 0.0
    %302 = vmatpush2.msra.mxu0 0.0
    %303 = vmatprep.subr.mxu0 0.0
    %304 = vmatpush2.msra.mxu0 0.0
    %305 = vmatprep.subr.mxu0 0.0
    %306 = vmatpush2.msra.mxu0 0.0
    %307 = vmatprep.subr.mxu0 0.0
    %308 = vmatpush2.msra.mxu0 0.0
    %309 = vmatprep.subr.mxu0 0.0
    %310 = vmatpush2.msra.mxu0 0.0
    %311 = vmatprep.subr.mxu0 0.0
    %312 = vmatpush2.msra.mxu0 0.0
    %313 = vmatprep.subr.mxu0 0.0
    %314 = vmatpush2.msra.mxu0 0.0
    %315 = vmatprep.subr.mxu0 0.0
    %316 = vmatpush2.msra.mxu0 0.0
    %317 = vmatprep.subr.mxu0 0.0
    %318 = vmatpush2.msra.mxu0 0.0
    %319 = vmatprep.mubr.f32.mxu0 0.0
    %320 = vmatmul.mubr.f32.gmra.mxu0 %v229
    %v321 = vpop.f32.mrf.mxu0
    %v322 = vadd.f32 %v253, %v321
    %v323 = vpop.f32.mrf.mxu0
    %324 = vdwg.mxu0
    %vm325 = vcmp.gt.f32.partialorder %v322, 0.0
    %v326 = vmul.f32 %v322, 0.01
    %v327 = vsel %vm325, %v322, %v326
    %v328 = vld [vmem:[#allocation8] sm:$0xff]
    %v329 = vld [vmem:[#allocation8 + $0x8] sm:$0xff]
    %v330 = vld [vmem:[#allocation8 + $0x10] sm:$0xff]
    %v331 = vld [vmem:[#allocation8 + $0x18] sm:$0xff]
    %v332 = vld [vmem:[#allocation8 + $0x20] sm:$0xff]
    %v333 = vld [vmem:[#allocation8 + $0x28] sm:$0xff]
    %v334 = vld [vmem:[#allocation8 + $0x30] sm:$0xff]
    %v335 = vld [vmem:[#allocation8 + $0x38] sm:$0xff]
    %v336 = vld [vmem:[#allocation8 + $0x40] sm:$0xff]
    %v337 = vld [vmem:[#allocation8 + $0x48] sm:$0xff]
    %v338 = vld [vmem:[#allocation8 + $0x50] sm:$0xff]
    %v339 = vld [vmem:[#allocation8 + $0x58] sm:$0xff]
    %v340 = vld [vmem:[#allocation8 + $0x60] sm:$0xff]
    %v341 = vld [vmem:[#allocation8 + $0x68] sm:$0xff]
    %v342 = vld [vmem:[#allocation8 + $0x70] sm:$0xff]
    %v343 = vld [vmem:[#allocation8 + $0x78] sm:$0xff]
    %v344 = vld [vmem:[%s6] sm:$0x1]
    %v346 = vlaneseq
    %v347 = vshrl.u32 %v346, 7
    %v348 = vsub.s32 0, %v347
    %v349 = vrot.slane %v344, %v348
    %351 = vmatprep.subr.mxu0 0.0
    %352 = vmatpush1.msra.mxu0 %v343
    %353 = vmatprep.subr.mxu0 0.0
    %354 = vmatpush1.msra.mxu0 %v342
    %355 = vmatprep.subr.mxu0 0.0
    %356 = vmatpush1.msra.mxu0 %v341
    %357 = vmatprep.subr.mxu0 0.0
    %358 = vmatpush1.msra.mxu0 %v340
    %359 = vmatprep.subr.mxu0 0.0
    %360 = vmatpush1.msra.mxu0 %v339
    %361 = vmatprep.subr.mxu0 0.0
    %362 = vmatpush1.msra.mxu0 %v338
    %363 = vmatprep.subr.mxu0 0.0
    %364 = vmatpush1.msra.mxu0 %v337
    %365 = vmatprep.subr.mxu0 0.0
    %366 = vmatpush1.msra.mxu0 %v336
    %367 = vmatprep.subr.mxu0 0.0
    %368 = vmatpush1.msra.mxu0 %v335
    %369 = vmatprep.subr.mxu0 0.0
    %370 = vmatpush1.msra.mxu0 %v334
    %371 = vmatprep.subr.mxu0 0.0
    %372 = vmatpush1.msra.mxu0 %v333
    %373 = vmatprep.subr.mxu0 0.0
    %374 = vmatpush1.msra.mxu0 %v332
    %375 = vmatprep.subr.mxu0 0.0
    %376 = vmatpush1.msra.mxu0 %v331
    %377 = vmatprep.subr.mxu0 0.0
    %378 = vmatpush1.msra.mxu0 %v330
    %379 = vmatprep.subr.mxu0 0.0
    %380 = vmatpush1.msra.mxu0 %v329
    %381 = vmatprep.subr.mxu0 0.0
    %382 = vmatpush1.msra.mxu0 %v328
    %383 = vmatprep.subr.mxu0 0.0
    %384 = vmatpush2.msra.mxu0 0.0
    %385 = vmatprep.subr.mxu0 0.0
    %386 = vmatpush2.msra.mxu0 0.0
    %387 = vmatprep.subr.mxu0 0.0
    %388 = vmatpush2.msra.mxu0 0.0
    %389 = vmatprep.subr.mxu0 0.0
    %390 = vmatpush2.msra.mxu0 0.0
    %391 = vmatprep.subr.mxu0 0.0
    %392 = vmatpush2.msra.mxu0 0.0
    %393 = vmatprep.subr.mxu0 0.0
    %394 = vmatpush2.msra.mxu0 0.0
    %395 = vmatprep.subr.mxu0 0.0
    %396 = vmatpush2.msra.mxu0 0.0
    %397 = vmatprep.subr.mxu0 0.0
    %398 = vmatpush2.msra.mxu0 0.0
    %399 = vmatprep.subr.mxu0 0.0
    %400 = vmatpush2.msra.mxu0 0.0
    %401 = vmatprep.subr.mxu0 0.0
    %402 = vmatpush2.msra.mxu0 0.0
    %403 = vmatprep.subr.mxu0 0.0
    %404 = vmatpush2.msra.mxu0 0.0
    %405 = vmatprep.subr.mxu0 0.0
    %406 = vmatpush2.msra.mxu0 0.0
    %407 = vmatprep.subr.mxu0 0.0
    %408 = vmatpush2.msra.mxu0 0.0
    %409 = vmatprep.subr.mxu0 0.0
    %410 = vmatpush2.msra.mxu0 0.0
    %411 = vmatprep.subr.mxu0 0.0
    %412 = vmatpush2.msra.mxu0 0.0
    %413 = vmatprep.subr.mxu0 0.0
    %414 = vmatpush2.msra.mxu0 0.0
    %415 = vmatprep.mubr.f32.mxu0 0.0
    %416 = vmatmul.mubr.f32.gmra.mxu0 %v327
    %v417 = vpop.f32.mrf.mxu0
    %v418 = vadd.f32 %v349, %v417
    %v419 = vpop.f32.mrf.mxu0
    %420 = vdwg.mxu0
    %v421 = vadd.f32 %v418, %v229
    %vm422 = vcmp.gt.f32.partialorder %v421, 0.0
    %v423 = vmul.f32 %v421, 0.01
    %v424 = vsel %vm422, %v421, %v423
    %v425 = vld [vmem:[#allocation10] sm:$0xff]
    %v426 = vld [vmem:[#allocation10 + $0x8] sm:$0xff]
    %v427 = vld [vmem:[#allocation10 + $0x10] sm:$0xff]
    %v428 = vld [vmem:[#allocation10 + $0x18] sm:$0xff]
    %v429 = vld [vmem:[#allocation10 + $0x20] sm:$0xff]
    %v430 = vld [vmem:[#allocation10 + $0x28] sm:$0xff]
    %v431 = vld [vmem:[#allocation10 + $0x30] sm:$0xff]
    %v432 = vld [vmem:[#allocation10 + $0x38] sm:$0xff]
    %v433 = vld [vmem:[#allocation10 + $0x40] sm:$0xff]
    %v434 = vld [vmem:[#allocation10 + $0x48] sm:$0xff]
    %v435 = vld [vmem:[#allocation10 + $0x50] sm:$0xff]
    %v436 = vld [vmem:[#allocation10 + $0x58] sm:$0xff]
    %v437 = vld [vmem:[#allocation10 + $0x60] sm:$0xff]
    %v438 = vld [vmem:[#allocation10 + $0x68] sm:$0xff]
    %v439 = vld [vmem:[#allocation10 + $0x70] sm:$0xff]
    %v440 = vld [vmem:[#allocation10 + $0x78] sm:$0xff]
    %v441 = vld [vmem:[%s8] sm:$0x1]
    %v443 = vlaneseq
    %v444 = vshrl.u32 %v443, 7
    %v445 = vsub.s32 0, %v444
    %v446 = vrot.slane %v441, %v445
    %448 = vmatprep.subr.mxu0 0.0
    %449 = vmatpush1.msra.mxu0 %v440
    %450 = vmatprep.subr.mxu0 0.0
    %451 = vmatpush1.msra.mxu0 %v439
    %452 = vmatprep.subr.mxu0 0.0
    %453 = vmatpush1.msra.mxu0 %v438
    %454 = vmatprep.subr.mxu0 0.0
    %455 = vmatpush1.msra.mxu0 %v437
    %456 = vmatprep.subr.mxu0 0.0
    %457 = vmatpush1.msra.mxu0 %v436
    %458 = vmatprep.subr.mxu0 0.0
    %459 = vmatpush1.msra.mxu0 %v435
    %460 = vmatprep.subr.mxu0 0.0
    %461 = vmatpush1.msra.mxu0 %v434
    %462 = vmatprep.subr.mxu0 0.0
    %463 = vmatpush1.msra.mxu0 %v433
    %464 = vmatprep.subr.mxu0 0.0
    %465 = vmatpush1.msra.mxu0 %v432
    %466 = vmatprep.subr.mxu0 0.0
    %467 = vmatpush1.msra.mxu0 %v431
    %468 = vmatprep.subr.mxu0 0.0
    %469 = vmatpush1.msra.mxu0 %v430
    %470 = vmatprep.subr.mxu0 0.0
    %471 = vmatpush1.msra.mxu0 %v429
    %472 = vmatprep.subr.mxu0 0.0
    %473 = vmatpush1.msra.mxu0 %v428
    %474 = vmatprep.subr.mxu0 0.0
    %475 = vmatpush1.msra.mxu0 %v427
    %476 = vmatprep.subr.mxu0 0.0
    %477 = vmatpush1.msra.mxu0 %v426
    %478 = vmatprep.subr.mxu0 0.0
    %479 = vmatpush1.msra.mxu0 %v425
    %480 = vmatprep.subr.mxu0 0.0
    %481 = vmatpush2.msra.mxu0 0.0
    %482 = vmatprep.subr.mxu0 0.0
    %483 = vmatpush2.msra.mxu0 0.0
    %484 = vmatprep.subr.mxu0 0.0
    %485 = vmatpush2.msra.mxu0 0.0
    %486 = vmatprep.subr.mxu0 0.0
    %487 = vmatpush2.msra.mxu0 0.0
    %488 = vmatprep.subr.mxu0 0.0
    %489 = vmatpush2.msra.mxu0 0.0
    %490 = vmatprep.subr.mxu0 0.0
    %491 = vmatpush2.msra.mxu0 0.0
    %492 = vmatprep.subr.mxu0 0.0
    %493 = vmatpush2.msra.mxu0 0.0
    %494 = vmatprep.subr.mxu0 0.0
    %495 = vmatpush2.msra.mxu0 0.0
    %496 = vmatprep.subr.mxu0 0.0
    %497 = vmatpush2.msra.mxu0 0.0
    %498 = vmatprep.subr.mxu0 0.0
    %499 = vmatpush2.msra.mxu0 0.0
    %500 = vmatprep.subr.mxu0 0.0
    %501 = vmatpush2.msra.mxu0 0.0
    %502 = vmatprep.subr.mxu0 0.0
    %503 = vmatpush2.msra.mxu0 0.0
    %504 = vmatprep.subr.mxu0 0.0
    %505 = vmatpush2.msra.mxu0 0.0
    %506 = vmatprep.subr.mxu0 0.0
    %507 = vmatpush2.msra.mxu0 0.0
    %508 = vmatprep.subr.mxu0 0.0
    %509 = vmatpush2.msra.mxu0 0.0
    %510 = vmatprep.subr.mxu0 0.0
    %511 = vmatpush2.msra.mxu0 0.0
    %512 = vmatprep.mubr.f32.mxu0 0.0
    %513 = vmatmul.mubr.f32.gmra.mxu0 %v424
    %v514 = vpop.f32.mrf.mxu0
    %v515 = vadd.f32 %v446, %v514
    %v516 = vpop.f32.mrf.mxu0
    %517 = vdwg.mxu0
    %vm518 = vcmp.gt.f32.partialorder %v515, 0.0
    %v519 = vmul.f32 %v515, 0.01
    %v520 = vsel %vm518, %v515, %v519
    %v521 = vld [vmem:[#allocation11] sm:$0xff]
    %v522 = vld [vmem:[#allocation11 + $0x8] sm:$0xff]
    %v523 = vld [vmem:[#allocation11 + $0x10] sm:$0xff]
    %v524 = vld [vmem:[#allocation11 + $0x18] sm:$0xff]
    %v525 = vld [vmem:[#allocation11 + $0x20] sm:$0xff]
    %v526 = vld [vmem:[#allocation11 + $0x28] sm:$0xff]
    %v527 = vld [vmem:[#allocation11 + $0x30] sm:$0xff]
    %v528 = vld [vmem:[#allocation11 + $0x38] sm:$0xff]
    %v529 = vld [vmem:[#allocation11 + $0x40] sm:$0xff]
    %v530 = vld [vmem:[#allocation11 + $0x48] sm:$0xff]
    %v531 = vld [vmem:[#allocation11 + $0x50] sm:$0xff]
    %v532 = vld [vmem:[#allocation11 + $0x58] sm:$0xff]
    %v533 = vld [vmem:[#allocation11 + $0x60] sm:$0xff]
    %v534 = vld [vmem:[#allocation11 + $0x68] sm:$0xff]
    %v535 = vld [vmem:[#allocation11 + $0x70] sm:$0xff]
    %v536 = vld [vmem:[#allocation11 + $0x78] sm:$0xff]
    %v537 = vld [vmem:[%s10] sm:$0x1]
    %v539 = vlaneseq
    %v540 = vshrl.u32 %v539, 7
    %v541 = vsub.s32 0, %v540
    %v542 = vrot.slane %v537, %v541
    %544 = vmatprep.subr.mxu0 0.0
    %545 = vmatpush1.msra.mxu0 %v536
    %546 = vmatprep.subr.mxu0 0.0
    %547 = vmatpush1.msra.mxu0 %v535
    %548 = vmatprep.subr.mxu0 0.0
    %549 = vmatpush1.msra.mxu0 %v534
    %550 = vmatprep.subr.mxu0 0.0
    %551 = vmatpush1.msra.mxu0 %v533
    %552 = vmatprep.subr.mxu0 0.0
    %553 = vmatpush1.msra.mxu0 %v532
    %554 = vmatprep.subr.mxu0 0.0
    %555 = vmatpush1.msra.mxu0 %v531
    %556 = vmatprep.subr.mxu0 0.0
    %557 = vmatpush1.msra.mxu0 %v530
    %558 = vmatprep.subr.mxu0 0.0
    %559 = vmatpush1.msra.mxu0 %v529
    %560 = vmatprep.subr.mxu0 0.0
    %561 = vmatpush1.msra.mxu0 %v528
    %562 = vmatprep.subr.mxu0 0.0
    %563 = vmatpush1.msra.mxu0 %v527
    %564 = vmatprep.subr.mxu0 0.0
    %565 = vmatpush1.msra.mxu0 %v526
    %566 = vmatprep.subr.mxu0 0.0
    %567 = vmatpush1.msra.mxu0 %v525
    %568 = vmatprep.subr.mxu0 0.0
    %569 = vmatpush1.msra.mxu0 %v524
    %570 = vmatprep.subr.mxu0 0.0
    %571 = vmatpush1.msra.mxu0 %v523
    %572 = vmatprep.subr.mxu0 0.0
    %573 = vmatpush1.msra.mxu0 %v522
    %574 = vmatprep.subr.mxu0 0.0
    %575 = vmatpush1.msra.mxu0 %v521
    %576 = vmatprep.subr.mxu0 0.0
    %577 = vmatpush2.msra.mxu0 0.0
    %578 = vmatprep.subr.mxu0 0.0
    %579 = vmatpush2.msra.mxu0 0.0
    %580 = vmatprep.subr.mxu0 0.0
    %581 = vmatpush2.msra.mxu0 0.0
    %582 = vmatprep.subr.mxu0 0.0
    %583 = vmatpush2.msra.mxu0 0.0
    %584 = vmatprep.subr.mxu0 0.0
    %585 = vmatpush2.msra.mxu0 0.0
    %586 = vmatprep.subr.mxu0 0.0
    %587 = vmatpush2.msra.mxu0 0.0
    %588 = vmatprep.subr.mxu0 0.0
    %589 = vmatpush2.msra.mxu0 0.0
    %590 = vmatprep.subr.mxu0 0.0
    %591 = vmatpush2.msra.mxu0 0.0
    %592 = vmatprep.subr.mxu0 0.0
    %593 = vmatpush2.msra.mxu0 0.0
    %594 = vmatprep.subr.mxu0 0.0
    %595 = vmatpush2.msra.mxu0 0.0
    %596 = vmatprep.subr.mxu0 0.0
    %597 = vmatpush2.msra.mxu0 0.0
    %598 = vmatprep.subr.mxu0 0.0
    %599 = vmatpush2.msra.mxu0 0.0
    %600 = vmatprep.subr.mxu0 0.0
    %601 = vmatpush2.msra.mxu0 0.0
    %602 = vmatprep.subr.mxu0 0.0
    %603 = vmatpush2.msra.mxu0 0.0
    %604 = vmatprep.subr.mxu0 0.0
    %605 = vmatpush2.msra.mxu0 0.0
    %606 = vmatprep.subr.mxu0 0.0
    %607 = vmatpush2.msra.mxu0 0.0
    %608 = vmatprep.mubr.f32.mxu0 0.0
    %609 = vmatmul.mubr.f32.gmra.mxu0 %v520
    %v610 = vpop.f32.mrf.mxu0
    %v611 = vadd.f32 %v542, %v610
    %v612 = vpop.f32.mrf.mxu0
    %613 = vdwg.mxu0
    %v614 = vld [vmem:[#allocation13] sm:$0xff]
    %v615 = vld [vmem:[#allocation13 + $0x8] sm:$0xff]
    %v616 = vld [vmem:[#allocation13 + $0x10] sm:$0xff]
    %v617 = vld [vmem:[#allocation13 + $0x18] sm:$0xff]
    %v618 = vld [vmem:[#allocation13 + $0x20] sm:$0xff]
    %v619 = vld [vmem:[#allocation13 + $0x28] sm:$0xff]
    %v620 = vld [vmem:[#allocation13 + $0x30] sm:$0xff]
    %v621 = vld [vmem:[#allocation13 + $0x38] sm:$0xff]
    %v622 = vld [vmem:[#allocation13 + $0x40] sm:$0xff]
    %v623 = vld [vmem:[#allocation13 + $0x48] sm:$0xff]
    %v624 = vld [vmem:[#allocation13 + $0x50] sm:$0xff]
    %v625 = vld [vmem:[#allocation13 + $0x58] sm:$0xff]
    %v626 = vld [vmem:[#allocation13 + $0x60] sm:$0xff]
    %v627 = vld [vmem:[#allocation13 + $0x68] sm:$0xff]
    %v628 = vld [vmem:[#allocation13 + $0x70] sm:$0xff]
    %v629 = vld [vmem:[#allocation13 + $0x78] sm:$0xff]
    %v630 = vld [vmem:[%s12] sm:$0x1]
    %v632 = vlaneseq
    %v633 = vshrl.u32 %v632, 7
    %v634 = vsub.s32 0, %v633
    %v635 = vrot.slane %v630, %v634
    %637 = vmatprep.subr.mxu0 0.0
    %638 = vmatpush1.msra.mxu0 %v629
    %639 = vmatprep.subr.mxu0 0.0
    %640 = vmatpush1.msra.mxu0 %v628
    %641 = vmatprep.subr.mxu0 0.0
    %642 = vmatpush1.msra.mxu0 %v627
    %643 = vmatprep.subr.mxu0 0.0
    %644 = vmatpush1.msra.mxu0 %v626
    %645 = vmatprep.subr.mxu0 0.0
    %646 = vmatpush1.msra.mxu0 %v625
    %647 = vmatprep.subr.mxu0 0.0
    %648 = vmatpush1.msra.mxu0 %v624
    %649 = vmatprep.subr.mxu0 0.0
    %650 = vmatpush1.msra.mxu0 %v623
    %651 = vmatprep.subr.mxu0 0.0
    %652 = vmatpush1.msra.mxu0 %v622
    %653 = vmatprep.subr.mxu0 0.0
    %654 = vmatpush1.msra.mxu0 %v621
    %655 = vmatprep.subr.mxu0 0.0
    %656 = vmatpush1.msra.mxu0 %v620
    %657 = vmatprep.subr.mxu0 0.0
    %658 = vmatpush1.msra.mxu0 %v619
    %659 = vmatprep.subr.mxu0 0.0
    %660 = vmatpush1.msra.mxu0 %v618
    %661 = vmatprep.subr.mxu0 0.0
    %662 = vmatpush1.msra.mxu0 %v617
    %663 = vmatprep.subr.mxu0 0.0
    %664 = vmatpush1.msra.mxu0 %v616
    %665 = vmatprep.subr.mxu0 0.0
    %666 = vmatpush1.msra.mxu0 %v615
    %667 = vmatprep.subr.mxu0 0.0
    %668 = vmatpush1.msra.mxu0 %v614
    %669 = vmatprep.subr.mxu0 0.0
    %670 = vmatpush2.msra.mxu0 0.0
    %671 = vmatprep.subr.mxu0 0.0
    %672 = vmatpush2.msra.mxu0 0.0
    %673 = vmatprep.subr.mxu0 0.0
    %674 = vmatpush2.msra.mxu0 0.0
    %675 = vmatprep.subr.mxu0 0.0
    %676 = vmatpush2.msra.mxu0 0.0
    %677 = vmatprep.subr.mxu0 0.0
    %678 = vmatpush2.msra.mxu0 0.0
    %679 = vmatprep.subr.mxu0 0.0
    %680 = vmatpush2.msra.mxu0 0.0
    %681 = vmatprep.subr.mxu0 0.0
    %682 = vmatpush2.msra.mxu0 0.0
    %683 = vmatprep.subr.mxu0 0.0
    %684 = vmatpush2.msra.mxu0 0.0
    %685 = vmatprep.subr.mxu0 0.0
    %686 = vmatpush2.msra.mxu0 0.0
    %687 = vmatprep.subr.mxu0 0.0
    %688 = vmatpush2.msra.mxu0 0.0
    %689 = vmatprep.subr.mxu0 0.0
    %690 = vmatpush2.msra.mxu0 0.0
    %691 = vmatprep.subr.mxu0 0.0
    %692 = vmatpush2.msra.mxu0 0.0
    %693 = vmatprep.subr.mxu0 0.0
    %694 = vmatpush2.msra.mxu0 0.0
    %695 = vmatprep.subr.mxu0 0.0
    %696 = vmatpush2.msra.mxu0 0.0
    %697 = vmatprep.subr.mxu0 0.0
    %698 = vmatpush2.msra.mxu0 0.0
    %699 = vmatprep.subr.mxu0 0.0
    %700 = vmatpush2.msra.mxu0 0.0
    %701 = vmatprep.mubr.f32.mxu0 0.0
    %702 = vmatmul.mubr.f32.gmra.mxu0 %v424
    %v703 = vpop.f32.mrf.mxu0
    %v704 = vadd.f32 %v635, %v703
    %v705 = vpop.f32.mrf.mxu0
    %706 = vdwg.mxu0
    %v707 = vadd.f32 %v611, %v704
    %vm708 = vcmp.gt.f32.partialorder %v707, 0.0
    %v709 = vmul.f32 %v707, 0.01
    %v710 = vsel %vm708, %v707, %v709
    %711 = vst [vmem:[#allocation14] sm:$0xff] %v710
    // Predicated region
    $region82: #{tpu_custom_call.1} parent=1 // pred_check
      _
    $region83: #{tpu_custom_call.1} parent=1 // pred_check_branch
      %713 = sbr.rel (0) target = $region85
    $region84: #{tpu_custom_call.1} parent=1 // pred_region
      %s715 = ssub.s32 128, 128
      %716 = vsyncadd [#allocation4], %s715
      %s718 = sshll.u32 [#allocation14], 4
      %s719 = int_to_ptr.vmem [resolvable:$true] %s718
      %721 = dma.vmem_to_hbm [thread:$0]  %s719, 128, %s13, [#allocation4]
    $region85: #{tpu_custom_call.1} parent=1 // pred_fallthru
      _
    // Predicated region
    $region86: #{tpu_custom_call.1} parent=1 // pred_check
      _
    $region87: #{tpu_custom_call.1} parent=1 // pred_check_branch
      %723 = sbr.rel (0) target = $region89
    $region88: #{tpu_custom_call.1} parent=1 // pred_region
      %724 = dma.done [#allocation4], 128
    $region89: #{tpu_custom_call.1} parent=1 // pred_fallthru
      _
    %725 = vsyncpa [#allocation3], 1
    %726 = vsyncpa [#allocation6], 1
    %727 = vsyncpa [#allocation9], 1
    %728 = vsyncpa [#allocation12], 1
    %729 = vsyncpa [#allocation4], 1

// kernel: tpu_custom_call.1
$region0: #{tpu_custom_call.1}
  #allocation0 [shape = 'u32[]', space=smem, size = 0x4, offset = 0x4, fixed_abs, tag = 'smem constant byte address 0x4 - core index']
  #allocation1 [shape = 'u32[144,128]{1,0:T(1,128)}', space=vmem, size = 0x12000, scoped, tag = 'internal scratch']
  %s0 = inlined_call_operand.hbm [shape: f32[8,128], index: 0, kind: input, shape index: {}]
  %s1 = inlined_call_operand.hbm [shape: f32[128,128], index: 1, kind: input, shape index: {}]
  %s2 = inlined_call_operand.vmem [shape: f32[1,128], index: 2, kind: input, shape index: {}]
  %s3 = inlined_call_operand.hbm [shape: f32[128,128], index: 3, kind: input, shape index: {}]
  %s4 = inlined_call_operand.vmem [shape: f32[1,128], index: 4, kind: input, shape index: {}]
  %s5 = inlined_call_operand.hbm [shape: f32[128,128], index: 5, kind: input, shape index: {}]
  %s6 = inlined_call_operand.vmem [shape: f32[1,128], index: 6, kind: input, shape index: {}]
  %s7 = inlined_call_operand.hbm [shape: f32[128,128], index: 7, kind: input, shape index: {}]
  %s8 = inlined_call_operand.vmem [shape: f32[1,128], index: 8, kind: input, shape index: {}]
  %s9 = inlined_call_operand.hbm [shape: f32[128,128], index: 9, kind: input, shape index: {}]
  %s10 = inlined_call_operand.vmem [shape: f32[1,128], index: 10, kind: input, shape index: {}]
  %s11 = inlined_call_operand.hbm [shape: f32[128,128], index: 11, kind: input, shape index: {}]
  %s12 = inlined_call_operand.vmem [shape: f32[1,128], index: 12, kind: input, shape index: {}]
  %s13 = inlined_call_operand.hbm [shape: f32[8,128], index: 13, kind: output, shape index: {}]
  %s14 = sld [smem:[#allocation0]]
  $region90: #{tpu_custom_call.1} parent=0
    _
  %s16 = ssub.s32 1, %s14
  %s17 = scalar_select 0, %s16, %s14
  $region1: #{tpu_custom_call.1} parent=0
    #allocation2 [shape = 'u8[4096]{0}', space=vmem, size = 0x1000, scoped, tag = 'input window, operand 0, single buffered']
    #allocation3 [shape = 's32[1]{0}', space=sflag, size = 0x4, scoped, tag = 'scoped memory for tpu_custom_call.1']
    #allocation4 [shape = 's32[1]{0}', space=sflag, size = 0x4, scoped, tag = 'scoped memory for tpu_custom_call.1']
    #allocation5 [shape = 'u8[65536]{0}', space=vmem, size = 0x10000, scoped, tag = 'input window, operand 1, single buffered']
    #allocation6 [shape = 's32[1]{0}', space=sflag, size = 0x4, scoped, tag = 'scoped memory for tpu_custom_call.1']
    #allocation7 [shape = 'u8[65536]{0}', space=vmem, size = 0x10000, scoped, tag = 'input window, operand 3, single buffered']
    #allocation8 [shape = 'u8[65536]{0}', space=vmem, size = 0x10000, scoped, tag = 'input window, operand 5, single buffered']
    #allocation9 [shape = 's32[1]{0}', space=sflag, size = 0x4, scoped, tag = 'scoped memory for tpu_custom_call.1']
    #allocation10 [shape = 'u8[65536]{0}', space=vmem, size = 0x10000, scoped, tag = 'input window, operand 7, single buffered']
    #allocation11 [shape = 'u8[65536]{0}', space=vmem, size = 0x10000, scoped, tag = 'input window, operand 9, single buffered']
    #allocation12 [shape = 's32[1]{0}', space=sflag, size = 0x4, scoped, tag = 'scoped memory for tpu_custom_call.1']
    #allocation13 [shape = 'u8[65536]{0}', space=vmem, size = 0x10000, scoped, tag = 'input window, operand 11, single buffered']
    #allocation14 [shape = 'u8[4096]{0}', space=vmem, size = 0x1000, scoped, tag = 'output window, operand 0, single buffered']
    %18 = vsyncpa [#allocation3], 0
    %19 = vsyncpa [#allocation6], 0
    %20 = vsyncpa [#allocation9], 0
    %21 = vsyncpa [#allocation12], 0
    %22 = vsyncpa [#allocation4], 0
    // Predicated region
    $region2: #{tpu_custom_call.1} parent=1 // pred_check
      _
    $region3: #{tpu_custom_call.1} parent=1 // pred_check_branch
      %24 = sbr.rel (0) target = $region5
    $region4: #{tpu_custom_call.1} parent=1 // pred_region
      %s26 = ssub.s32 128, 128
      %27 = vsyncadd [#allocation3], %s26
      %s29 = sshll.u32 [#allocation2], 4
      %s30 = int_to_ptr.vmem [resolvable:$true] %s29
      %32 = dma.hbm_to_vmem [thread:$0]  %s0, 128, %s30, [#allocation3]
    $region5: #{tpu_custom_call.1} parent=1 // pred_fallthru
      _
    // Predicated region
    $region6: #{tpu_custom_call.1} parent=1 // pred_check
      _
    $region7: #{tpu_custom_call.1} parent=1 // pred_check_branch
      %34 = sbr.rel (0) target = $region9
    $region8: #{tpu_custom_call.1} parent=1 // pred_region
      %s36 = ssub.s32 2048, 2048
      %37 = vsyncadd [#allocation6], %s36
      %s38 = sshll.u32 [#allocation5], 4
      %s39 = int_to_ptr.vmem [resolvable:$true] %s38
      %44 = dma.hbm_to_vmem [thread:$0]  %s1, 2048, %s39, [#allocation6], 128, 128, 8
    $region9: #{tpu_custom_call.1} parent=1 // pred_fallthru
      _
    // Predicated region
    $region10: #{tpu_custom_call.1} parent=1 // pred_check
      _
    $region11: #{tpu_custom_call.1} parent=1 // pred_check_branch
      %46 = sbr.rel (0) target = $region13
    $region12: #{tpu_custom_call.1} parent=1 // pred_region
      _
    $region13: #{tpu_custom_call.1} parent=1 // pred_fallthru
      _
    // Predicated region
    $region14: #{tpu_custom_call.1} parent=1 // pred_check
      _
    $region15: #{tpu_custom_call.1} parent=1 // pred_check_branch
      %48 = sbr.rel (0) target = $region17
    $region16: #{tpu_custom_call.1} parent=1 // pred_region
      %s50 = ssub.s32 2048, 2048
      %51 = vsyncadd [#allocation6], %s50
      %s52 = sshll.u32 [#allocation7], 4
      %s53 = int_to_ptr.vmem [resolvable:$true] %s52
      %58 = dma.hbm_to_vmem [thread:$0]  %s3, 2048, %s53, [#allocation6], 128, 128, 8
    $region17: #{tpu_custom_call.1} parent=1 // pred_fallthru
      _
    // Predicated region
    $region18: #{tpu_custom_call.1} parent=1 // pred_check
      _
    $region19: #{tpu_custom_call.1} parent=1 // pred_check_branch
      %60 = sbr.rel (0) target = $region21
    $region20: #{tpu_custom_call.1} parent=1 // pred_region
      _
    $region21: #{tpu_custom_call.1} parent=1 // pred_fallthru
      _
    // Predicated region
    $region22: #{tpu_custom_call.1} parent=1 // pred_check
      _
    $region23: #{tpu_custom_call.1} parent=1 // pred_check_branch
      %62 = sbr.rel (0) target = $region25
    $region24: #{tpu_custom_call.1} parent=1 // pred_region
      %s64 = ssub.s32 2048, 2048
      %65 = vsyncadd [#allocation9], %s64
      %s66 = sshll.u32 [#allocation8], 4
      %s67 = int_to_ptr.vmem [resolvable:$true] %s66
      %72 = dma.hbm_to_vmem [thread:$0]  %s5, 2048, %s67, [#allocation9], 128, 128, 8
    $region25: #{tpu_custom_call.1} parent=1 // pred_fallthru
      _
    // Predicated region
    $region26: #{tpu_custom_call.1} parent=1 // pred_check
      _
    $region27: #{tpu_custom_call.1} parent=1 // pred_check_branch
      %74 = sbr.rel (0) target = $region29
    $region28: #{tpu_custom_call.1} parent=1 // pred_region
      _
    $region29: #{tpu_custom_call.1} parent=1 // pred_fallthru
      _
    // Predicated region
    $region30: #{tpu_custom_call.1} parent=1 // pred_check
      _
    $region31: #{tpu_custom_call.1} parent=1 // pred_check_branch
      %76 = sbr.rel (0) target = $region33
    $region32: #{tpu_custom_call.1} parent=1 // pred_region
      %s78 = ssub.s32 2048, 2048
      %79 = vsyncadd [#allocation9], %s78
      %s80 = sshll.u32 [#allocation10], 4
      %s81 = int_to_ptr.vmem [resolvable:$true] %s80
      %86 = dma.hbm_to_vmem [thread:$0]  %s7, 2048, %s81, [#allocation9], 128, 128, 8
    $region33: #{tpu_custom_call.1} parent=1 // pred_fallthru
      _
    // Predicated region
    $region34: #{tpu_custom_call.1} parent=1 // pred_check
      _
    $region35: #{tpu_custom_call.1} parent=1 // pred_check_branch
      %88 = sbr.rel (0) target = $region37
    $region36: #{tpu_custom_call.1} parent=1 // pred_region
      _
    $region37: #{tpu_custom_call.1} parent=1 // pred_fallthru
      _
    // Predicated region
    $region38: #{tpu_custom_call.1} parent=1 // pred_check
      _
    $region39: #{tpu_custom_call.1} parent=1 // pred_check_branch
      %90 = sbr.rel (0) target = $region41
    $region40: #{tpu_custom_call.1} parent=1 // pred_region
      %s92 = ssub.s32 2048, 2048
      %93 = vsyncadd [#allocation12], %s92
      %s94 = sshll.u32 [#allocation11], 4
      %s95 = int_to_ptr.vmem [resolvable:$true] %s94
      %100 = dma.hbm_to_vmem [thread:$0]  %s9, 2048, %s95, [#allocation12], 128, 128, 8
    $region41: #{tpu_custom_call.1} parent=1 // pred_fallthru
      _
    // Predicated region
    $region42: #{tpu_custom_call.1} parent=1 // pred_check
      _
    $region43: #{tpu_custom_call.1} parent=1 // pred_check_branch
      %102 = sbr.rel (0) target = $region45
    $region44: #{tpu_custom_call.1} parent=1 // pred_region
      _
    $region45: #{tpu_custom_call.1} parent=1 // pred_fallthru
      _
    // Predicated region
    $region46: #{tpu_custom_call.1} parent=1 // pred_check
      _
    $region47: #{tpu_custom_call.1} parent=1 // pred_check_branch
      %104 = sbr.rel (0) target = $region49
    $region48: #{tpu_custom_call.1} parent=1 // pred_region
      %s106 = ssub.s32 2048, 2048
      %107 = vsyncadd [#allocation12], %s106
      %s108 = sshll.u32 [#allocation13], 4
      %s109 = int_to_ptr.vmem [resolvable:$true] %s108
      %114 = dma.hbm_to_vmem [thread:$0]  %s11, 2048, %s109, [#allocation12], 128, 128, 8
    $region49: #{tpu_custom_call.1} parent=1 // pred_fallthru
      _
    // Predicated region
    $region50: #{tpu_custom_call.1} parent=1 // pred_check
      _
    $region51: #{tpu_custom_call.1} parent=1 // pred_check_branch
      %116 = sbr.rel (0) target = $region53
    $region52: #{tpu_custom_call.1} parent=1 // pred_region
      _
    $region53: #{tpu_custom_call.1} parent=1 // pred_fallthru
      _
    // Predicated region
    $region54: #{tpu_custom_call.1} parent=1 // pred_check
      _
    $region55: #{tpu_custom_call.1} parent=1 // pred_check_branch
      %118 = sbr.rel (0) target = $region57
    $region56: #{tpu_custom_call.1} parent=1 // pred_region
      %119 = dma.done [#allocation3], 128
    $region57: #{tpu_custom_call.1} parent=1 // pred_fallthru
      _
    // Predicated region
    $region58: #{tpu_custom_call.1} parent=1 // pred_check
      _
    $region59: #{tpu_custom_call.1} parent=1 // pred_check_branch
      %121 = sbr.rel (0) target = $region61
    $region60: #{tpu_custom_call.1} parent=1 // pred_region
      %122 = dma.done [#allocation6], 2048
    $region61: #{tpu_custom_call.1} parent=1 // pred_fallthru
      _
    // Predicated region
    $region62: #{tpu_custom_call.1} parent=1 // pred_check
      _
    $region63: #{tpu_custom_call.1} parent=1 // pred_check_branch
      %124 = sbr.rel (0) target = $region65
    $region64: #{tpu_custom_call.1} parent=1 // pred_region
      %125 = dma.done [#allocation6], 2048
    $region65: #{tpu_custom_call.1} parent=1 // pred_fallthru
      _
    // Predicated region
    $region66: #{tpu_custom_call.1} parent=1 // pred_check
      _
    $region67: #{tpu_custom_call.1} parent=1 // pred_check_branch
      %127 = sbr.rel (0) target = $region69
    $region68: #{tpu_custom_call.1} parent=1 // pred_region
      %128 = dma.done [#allocation9], 2048
    $region69: #{tpu_custom_call.1} parent=1 // pred_fallthru
      _
    // Predicated region
    $region70: #{tpu_custom_call.1} parent=1 // pred_check
      _
    $region71: #{tpu_custom_call.1} parent=1 // pred_check_branch
      %130 = sbr.rel (0) target = $region73
    $region72: #{tpu_custom_call.1} parent=1 // pred_region
      %131 = dma.done [#allocation9], 2048
    $region73: #{tpu_custom_call.1} parent=1 // pred_fallthru
      _
    // Predicated region
    $region74: #{tpu_custom_call.1} parent=1 // pred_check
      _
    $region75: #{tpu_custom_call.1} parent=1 // pred_check_branch
      %133 = sbr.rel (0) target = $region77
    $region76: #{tpu_custom_call.1} parent=1 // pred_region
      %134 = dma.done [#allocation12], 2048
    $region77: #{tpu_custom_call.1} parent=1 // pred_fallthru
      _
    // Predicated region
    $region78: #{tpu_custom_call.1} parent=1 // pred_check
      _
    $region79: #{tpu_custom_call.1} parent=1 // pred_check_branch
      %136 = sbr.rel (0) target = $region81
    $region80: #{tpu_custom_call.1} parent=1 // pred_region
      %137 = dma.done [#allocation12], 2048
    $region81: #{tpu_custom_call.1} parent=1 // pred_fallthru
      _
    %v138 = vld [vmem:[#allocation2] sm:$0xff]
    %v139 = vld [vmem:[#allocation5] sm:$0xff]
    %v140 = vld [vmem:[#allocation5 + $0x8] sm:$0xff]
    %v141 = vld [vmem:[#allocation5 + $0x10] sm:$0xff]
    %v142 = vld [vmem:[#allocation5 + $0x18] sm:$0xff]
    %v143 = vld [vmem:[#allocation5 + $0x20] sm:$0xff]
    %v144 = vld [vmem:[#allocation5 + $0x28] sm:$0xff]
    %v145 = vld [vmem:[#allocation5 + $0x30] sm:$0xff]
    %v146 = vld [vmem:[#allocation5 + $0x38] sm:$0xff]
    %v147 = vld [vmem:[#allocation5 + $0x40] sm:$0xff]
    %v148 = vld [vmem:[#allocation5 + $0x48] sm:$0xff]
    %v149 = vld [vmem:[#allocation5 + $0x50] sm:$0xff]
    %v150 = vld [vmem:[#allocation5 + $0x58] sm:$0xff]
    %v151 = vld [vmem:[#allocation5 + $0x60] sm:$0xff]
    %v152 = vld [vmem:[#allocation5 + $0x68] sm:$0xff]
    %v153 = vld [vmem:[#allocation5 + $0x70] sm:$0xff]
    %v154 = vld [vmem:[#allocation5 + $0x78] sm:$0xff]
    %v155 = vld [vmem:[%s2] sm:$0x1]
    %v157 = vlaneseq
    %v158 = vshrl.u32 %v157, 7
    %v159 = vsub.s32 0, %v158
    %v160 = vrot.slane %v155, %v159
    %162 = vmatprep.subr.mxu0 0.0
    %163 = vmatpush1.msra.mxu0 %v154
    %164 = vmatprep.subr.mxu0 0.0
    %165 = vmatpush1.msra.mxu0 %v153
    %166 = vmatprep.subr.mxu0 0.0
    %167 = vmatpush1.msra.mxu0 %v152
    %168 = vmatprep.subr.mxu0 0.0
    %169 = vmatpush1.msra.mxu0 %v151
    %170 = vmatprep.subr.mxu0 0.0
    %171 = vmatpush1.msra.mxu0 %v150
    %172 = vmatprep.subr.mxu0 0.0
    %173 = vmatpush1.msra.mxu0 %v149
    %174 = vmatprep.subr.mxu0 0.0
    %175 = vmatpush1.msra.mxu0 %v148
    %176 = vmatprep.subr.mxu0 0.0
    %177 = vmatpush1.msra.mxu0 %v147
    %178 = vmatprep.subr.mxu0 0.0
    %179 = vmatpush1.msra.mxu0 %v146
    %180 = vmatprep.subr.mxu0 0.0
    %181 = vmatpush1.msra.mxu0 %v145
    %182 = vmatprep.subr.mxu0 0.0
    %183 = vmatpush1.msra.mxu0 %v144
    %184 = vmatprep.subr.mxu0 0.0
    %185 = vmatpush1.msra.mxu0 %v143
    %186 = vmatprep.subr.mxu0 0.0
    %187 = vmatpush1.msra.mxu0 %v142
    %188 = vmatprep.subr.mxu0 0.0
    %189 = vmatpush1.msra.mxu0 %v141
    %190 = vmatprep.subr.mxu0 0.0
    %191 = vmatpush1.msra.mxu0 %v140
    %192 = vmatprep.subr.mxu0 0.0
    %193 = vmatpush1.msra.mxu0 %v139
    %194 = vmatprep.subr.mxu0 0.0
    %195 = vmatpush2.msra.mxu0 0.0
    %196 = vmatprep.subr.mxu0 0.0
    %197 = vmatpush2.msra.mxu0 0.0
    %198 = vmatprep.subr.mxu0 0.0
    %199 = vmatpush2.msra.mxu0 0.0
    %200 = vmatprep.subr.mxu0 0.0
    %201 = vmatpush2.msra.mxu0 0.0
    %202 = vmatprep.subr.mxu0 0.0
    %203 = vmatpush2.msra.mxu0 0.0
    %204 = vmatprep.subr.mxu0 0.0
    %205 = vmatpush2.msra.mxu0 0.0
    %206 = vmatprep.subr.mxu0 0.0
    %207 = vmatpush2.msra.mxu0 0.0
    %208 = vmatprep.subr.mxu0 0.0
    %209 = vmatpush2.msra.mxu0 0.0
    %210 = vmatprep.subr.mxu0 0.0
    %211 = vmatpush2.msra.mxu0 0.0
    %212 = vmatprep.subr.mxu0 0.0
    %213 = vmatpush2.msra.mxu0 0.0
    %214 = vmatprep.subr.mxu0 0.0
    %215 = vmatpush2.msra.mxu0 0.0
    %216 = vmatprep.subr.mxu0 0.0
    %217 = vmatpush2.msra.mxu0 0.0
    %218 = vmatprep.subr.mxu0 0.0
    %219 = vmatpush2.msra.mxu0 0.0
    %220 = vmatprep.subr.mxu0 0.0
    %221 = vmatpush2.msra.mxu0 0.0
    %222 = vmatprep.subr.mxu0 0.0
    %223 = vmatpush2.msra.mxu0 0.0
    %224 = vmatprep.subr.mxu0 0.0
    %225 = vmatpush2.msra.mxu0 0.0
    %226 = vmatprep.mubr.f32.mxu0 0.0
    %227 = vmatmul.mubr.f32.gmra.mxu0 %v138
    %v228 = vpop.f32.mrf.mxu0
    %v229 = vadd.f32 %v160, %v228
    %v230 = vpop.f32.mrf.mxu0
    %231 = vdwg.mxu0
    %v232 = vld [vmem:[#allocation7] sm:$0xff]
    %v233 = vld [vmem:[#allocation7 + $0x8] sm:$0xff]
    %v234 = vld [vmem:[#allocation7 + $0x10] sm:$0xff]
    %v235 = vld [vmem:[#allocation7 + $0x18] sm:$0xff]
    %v236 = vld [vmem:[#allocation7 + $0x20] sm:$0xff]
    %v237 = vld [vmem:[#allocation7 + $0x28] sm:$0xff]
    %v238 = vld [vmem:[#allocation7 + $0x30] sm:$0xff]
    %v239 = vld [vmem:[#allocation7 + $0x38] sm:$0xff]
    %v240 = vld [vmem:[#allocation7 + $0x40] sm:$0xff]
    %v241 = vld [vmem:[#allocation7 + $0x48] sm:$0xff]
    %v242 = vld [vmem:[#allocation7 + $0x50] sm:$0xff]
    %v243 = vld [vmem:[#allocation7 + $0x58] sm:$0xff]
    %v244 = vld [vmem:[#allocation7 + $0x60] sm:$0xff]
    %v245 = vld [vmem:[#allocation7 + $0x68] sm:$0xff]
    %v246 = vld [vmem:[#allocation7 + $0x70] sm:$0xff]
    %v247 = vld [vmem:[#allocation7 + $0x78] sm:$0xff]
    %v248 = vld [vmem:[%s4] sm:$0x1]
    %v250 = vlaneseq
    %v251 = vshrl.u32 %v250, 7
    %v252 = vsub.s32 0, %v251
    %v253 = vrot.slane %v248, %v252
    %255 = vmatprep.subr.mxu0 0.0
    %256 = vmatpush1.msra.mxu0 %v247
    %257 = vmatprep.subr.mxu0 0.0
    %258 = vmatpush1.msra.mxu0 %v246
    %259 = vmatprep.subr.mxu0 0.0
    %260 = vmatpush1.msra.mxu0 %v245
    %261 = vmatprep.subr.mxu0 0.0
    %262 = vmatpush1.msra.mxu0 %v244
    %263 = vmatprep.subr.mxu0 0.0
    %264 = vmatpush1.msra.mxu0 %v243
    %265 = vmatprep.subr.mxu0 0.0
    %266 = vmatpush1.msra.mxu0 %v242
    %267 = vmatprep.subr.mxu0 0.0
    %268 = vmatpush1.msra.mxu0 %v241
    %269 = vmatprep.subr.mxu0 0.0
    %270 = vmatpush1.msra.mxu0 %v240
    %271 = vmatprep.subr.mxu0 0.0
    %272 = vmatpush1.msra.mxu0 %v239
    %273 = vmatprep.subr.mxu0 0.0
    %274 = vmatpush1.msra.mxu0 %v238
    %275 = vmatprep.subr.mxu0 0.0
    %276 = vmatpush1.msra.mxu0 %v237
    %277 = vmatprep.subr.mxu0 0.0
    %278 = vmatpush1.msra.mxu0 %v236
    %279 = vmatprep.subr.mxu0 0.0
    %280 = vmatpush1.msra.mxu0 %v235
    %281 = vmatprep.subr.mxu0 0.0
    %282 = vmatpush1.msra.mxu0 %v234
    %283 = vmatprep.subr.mxu0 0.0
    %284 = vmatpush1.msra.mxu0 %v233
    %285 = vmatprep.subr.mxu0 0.0
    %286 = vmatpush1.msra.mxu0 %v232
    %287 = vmatprep.subr.mxu0 0.0
    %288 = vmatpush2.msra.mxu0 0.0
    %289 = vmatprep.subr.mxu0 0.0
    %290 = vmatpush2.msra.mxu0 0.0
    %291 = vmatprep.subr.mxu0 0.0
    %292 = vmatpush2.msra.mxu0 0.0
    %293 = vmatprep.subr.mxu0 0.0
    %294 = vmatpush2.msra.mxu0 0.0
    %295 = vmatprep.subr.mxu0 0.0
    %296 = vmatpush2.msra.mxu0 0.0
    %297 = vmatprep.subr.mxu0 0.0
    %298 = vmatpush2.msra.mxu0 0.0
    %299 = vmatprep.subr.mxu0 0.0
    %300 = vmatpush2.msra.mxu0 0.0
    %301 = vmatprep.subr.mxu0 0.0
    %302 = vmatpush2.msra.mxu0 0.0
    %303 = vmatprep.subr.mxu0 0.0
    %304 = vmatpush2.msra.mxu0 0.0
    %305 = vmatprep.subr.mxu0 0.0
    %306 = vmatpush2.msra.mxu0 0.0
    %307 = vmatprep.subr.mxu0 0.0
    %308 = vmatpush2.msra.mxu0 0.0
    %309 = vmatprep.subr.mxu0 0.0
    %310 = vmatpush2.msra.mxu0 0.0
    %311 = vmatprep.subr.mxu0 0.0
    %312 = vmatpush2.msra.mxu0 0.0
    %313 = vmatprep.subr.mxu0 0.0
    %314 = vmatpush2.msra.mxu0 0.0
    %315 = vmatprep.subr.mxu0 0.0
    %316 = vmatpush2.msra.mxu0 0.0
    %317 = vmatprep.subr.mxu0 0.0
    %318 = vmatpush2.msra.mxu0 0.0
    %319 = vmatprep.mubr.f32.mxu0 0.0
    %320 = vmatmul.mubr.f32.gmra.mxu0 %v229
    %v321 = vpop.f32.mrf.mxu0
    %v322 = vadd.f32 %v253, %v321
    %v323 = vpop.f32.mrf.mxu0
    %324 = vdwg.mxu0
    %vm325 = vcmp.gt.f32.partialorder %v322, 0.0
    %v326 = vmul.f32 %v322, 0.01
    %v327 = vsel %vm325, %v322, %v326
    %v328 = vld [vmem:[#allocation8] sm:$0xff]
    %v329 = vld [vmem:[#allocation8 + $0x8] sm:$0xff]
    %v330 = vld [vmem:[#allocation8 + $0x10] sm:$0xff]
    %v331 = vld [vmem:[#allocation8 + $0x18] sm:$0xff]
    %v332 = vld [vmem:[#allocation8 + $0x20] sm:$0xff]
    %v333 = vld [vmem:[#allocation8 + $0x28] sm:$0xff]
    %v334 = vld [vmem:[#allocation8 + $0x30] sm:$0xff]
    %v335 = vld [vmem:[#allocation8 + $0x38] sm:$0xff]
    %v336 = vld [vmem:[#allocation8 + $0x40] sm:$0xff]
    %v337 = vld [vmem:[#allocation8 + $0x48] sm:$0xff]
    %v338 = vld [vmem:[#allocation8 + $0x50] sm:$0xff]
    %v339 = vld [vmem:[#allocation8 + $0x58] sm:$0xff]
    %v340 = vld [vmem:[#allocation8 + $0x60] sm:$0xff]
    %v341 = vld [vmem:[#allocation8 + $0x68] sm:$0xff]
    %v342 = vld [vmem:[#allocation8 + $0x70] sm:$0xff]
    %v343 = vld [vmem:[#allocation8 + $0x78] sm:$0xff]
    %v344 = vld [vmem:[%s6] sm:$0x1]
    %v346 = vlaneseq
    %v347 = vshrl.u32 %v346, 7
    %v348 = vsub.s32 0, %v347
    %v349 = vrot.slane %v344, %v348
    %351 = vmatprep.subr.mxu0 0.0
    %352 = vmatpush1.msra.mxu0 %v343
    %353 = vmatprep.subr.mxu0 0.0
    %354 = vmatpush1.msra.mxu0 %v342
    %355 = vmatprep.subr.mxu0 0.0
    %356 = vmatpush1.msra.mxu0 %v341
    %357 = vmatprep.subr.mxu0 0.0
    %358 = vmatpush1.msra.mxu0 %v340
    %359 = vmatprep.subr.mxu0 0.0
    %360 = vmatpush1.msra.mxu0 %v339
    %361 = vmatprep.subr.mxu0 0.0
    %362 = vmatpush1.msra.mxu0 %v338
    %363 = vmatprep.subr.mxu0 0.0
    %364 = vmatpush1.msra.mxu0 %v337
    %365 = vmatprep.subr.mxu0 0.0
    %366 = vmatpush1.msra.mxu0 %v336
    %367 = vmatprep.subr.mxu0 0.0
    %368 = vmatpush1.msra.mxu0 %v335
    %369 = vmatprep.subr.mxu0 0.0
    %370 = vmatpush1.msra.mxu0 %v334
    %371 = vmatprep.subr.mxu0 0.0
    %372 = vmatpush1.msra.mxu0 %v333
    %373 = vmatprep.subr.mxu0 0.0
    %374 = vmatpush1.msra.mxu0 %v332
    %375 = vmatprep.subr.mxu0 0.0
    %376 = vmatpush1.msra.mxu0 %v331
    %377 = vmatprep.subr.mxu0 0.0
    %378 = vmatpush1.msra.mxu0 %v330
    %379 = vmatprep.subr.mxu0 0.0
    %380 = vmatpush1.msra.mxu0 %v329
    %381 = vmatprep.subr.mxu0 0.0
    %382 = vmatpush1.msra.mxu0 %v328
    %383 = vmatprep.subr.mxu0 0.0
    %384 = vmatpush2.msra.mxu0 0.0
    %385 = vmatprep.subr.mxu0 0.0
    %386 = vmatpush2.msra.mxu0 0.0
    %387 = vmatprep.subr.mxu0 0.0
    %388 = vmatpush2.msra.mxu0 0.0
    %389 = vmatprep.subr.mxu0 0.0
    %390 = vmatpush2.msra.mxu0 0.0
    %391 = vmatprep.subr.mxu0 0.0
    %392 = vmatpush2.msra.mxu0 0.0
    %393 = vmatprep.subr.mxu0 0.0
    %394 = vmatpush2.msra.mxu0 0.0
    %395 = vmatprep.subr.mxu0 0.0
    %396 = vmatpush2.msra.mxu0 0.0
    %397 = vmatprep.subr.mxu0 0.0
    %398 = vmatpush2.msra.mxu0 0.0
    %399 = vmatprep.subr.mxu0 0.0
    %400 = vmatpush2.msra.mxu0 0.0
    %401 = vmatprep.subr.mxu0 0.0
    %402 = vmatpush2.msra.mxu0 0.0
    %403 = vmatprep.subr.mxu0 0.0
    %404 = vmatpush2.msra.mxu0 0.0
    %405 = vmatprep.subr.mxu0 0.0
    %406 = vmatpush2.msra.mxu0 0.0
    %407 = vmatprep.subr.mxu0 0.0
    %408 = vmatpush2.msra.mxu0 0.0
    %409 = vmatprep.subr.mxu0 0.0
    %410 = vmatpush2.msra.mxu0 0.0
    %411 = vmatprep.subr.mxu0 0.0
    %412 = vmatpush2.msra.mxu0 0.0
    %413 = vmatprep.subr.mxu0 0.0
    %414 = vmatpush2.msra.mxu0 0.0
    %415 = vmatprep.mubr.f32.mxu0 0.0
    %416 = vmatmul.mubr.f32.gmra.mxu0 %v327
    %v417 = vpop.f32.mrf.mxu0
    %v418 = vadd.f32 %v349, %v417
    %v419 = vpop.f32.mrf.mxu0
    %420 = vdwg.mxu0
    %v421 = vadd.f32 %v418, %v229
    %vm422 = vcmp.gt.f32.partialorder %v421, 0.0
    %v423 = vmul.f32 %v421, 0.01
    %v424 = vsel %vm422, %v421, %v423
    %v425 = vld [vmem:[#allocation10] sm:$0xff]
    %v426 = vld [vmem:[#allocation10 + $0x8] sm:$0xff]
    %v427 = vld [vmem:[#allocation10 + $0x10] sm:$0xff]
    %v428 = vld [vmem:[#allocation10 + $0x18] sm:$0xff]
    %v429 = vld [vmem:[#allocation10 + $0x20] sm:$0xff]
    %v430 = vld [vmem:[#allocation10 + $0x28] sm:$0xff]
    %v431 = vld [vmem:[#allocation10 + $0x30] sm:$0xff]
    %v432 = vld [vmem:[#allocation10 + $0x38] sm:$0xff]
    %v433 = vld [vmem:[#allocation10 + $0x40] sm:$0xff]
    %v434 = vld [vmem:[#allocation10 + $0x48] sm:$0xff]
    %v435 = vld [vmem:[#allocation10 + $0x50] sm:$0xff]
    %v436 = vld [vmem:[#allocation10 + $0x58] sm:$0xff]
    %v437 = vld [vmem:[#allocation10 + $0x60] sm:$0xff]
    %v438 = vld [vmem:[#allocation10 + $0x68] sm:$0xff]
    %v439 = vld [vmem:[#allocation10 + $0x70] sm:$0xff]
    %v440 = vld [vmem:[#allocation10 + $0x78] sm:$0xff]
    %v441 = vld [vmem:[%s8] sm:$0x1]
    %v443 = vlaneseq
    %v444 = vshrl.u32 %v443, 7
    %v445 = vsub.s32 0, %v444
    %v446 = vrot.slane %v441, %v445
    %448 = vmatprep.subr.mxu0 0.0
    %449 = vmatpush1.msra.mxu0 %v440
    %450 = vmatprep.subr.mxu0 0.0
    %451 = vmatpush1.msra.mxu0 %v439
    %452 = vmatprep.subr.mxu0 0.0
    %453 = vmatpush1.msra.mxu0 %v438
    %454 = vmatprep.subr.mxu0 0.0
    %455 = vmatpush1.msra.mxu0 %v437
    %456 = vmatprep.subr.mxu0 0.0
    %457 = vmatpush1.msra.mxu0 %v436
    %458 = vmatprep.subr.mxu0 0.0
    %459 = vmatpush1.msra.mxu0 %v435
    %460 = vmatprep.subr.mxu0 0.0
    %461 = vmatpush1.msra.mxu0 %v434
    %462 = vmatprep.subr.mxu0 0.0
    %463 = vmatpush1.msra.mxu0 %v433
    %464 = vmatprep.subr.mxu0 0.0
    %465 = vmatpush1.msra.mxu0 %v432
    %466 = vmatprep.subr.mxu0 0.0
    %467 = vmatpush1.msra.mxu0 %v431
    %468 = vmatprep.subr.mxu0 0.0
    %469 = vmatpush1.msra.mxu0 %v430
    %470 = vmatprep.subr.mxu0 0.0
    %471 = vmatpush1.msra.mxu0 %v429
    %472 = vmatprep.subr.mxu0 0.0
    %473 = vmatpush1.msra.mxu0 %v428
    %474 = vmatprep.subr.mxu0 0.0
    %475 = vmatpush1.msra.mxu0 %v427
    %476 = vmatprep.subr.mxu0 0.0
    %477 = vmatpush1.msra.mxu0 %v426
    %478 = vmatprep.subr.mxu0 0.0
    %479 = vmatpush1.msra.mxu0 %v425
    %480 = vmatprep.subr.mxu0 0.0
    %481 = vmatpush2.msra.mxu0 0.0
    %482 = vmatprep.subr.mxu0 0.0
    %483 = vmatpush2.msra.mxu0 0.0
    %484 = vmatprep.subr.mxu0 0.0
    %485 = vmatpush2.msra.mxu0 0.0
    %486 = vmatprep.subr.mxu0 0.0
    %487 = vmatpush2.msra.mxu0 0.0
    %488 = vmatprep.subr.mxu0 0.0
    %489 = vmatpush2.msra.mxu0 0.0
    %490 = vmatprep.subr.mxu0 0.0
    %491 = vmatpush2.msra.mxu0 0.0
    %492 = vmatprep.subr.mxu0 0.0
    %493 = vmatpush2.msra.mxu0 0.0
    %494 = vmatprep.subr.mxu0 0.0
    %495 = vmatpush2.msra.mxu0 0.0
    %496 = vmatprep.subr.mxu0 0.0
    %497 = vmatpush2.msra.mxu0 0.0
    %498 = vmatprep.subr.mxu0 0.0
    %499 = vmatpush2.msra.mxu0 0.0
    %500 = vmatprep.subr.mxu0 0.0
    %501 = vmatpush2.msra.mxu0 0.0
    %502 = vmatprep.subr.mxu0 0.0
    %503 = vmatpush2.msra.mxu0 0.0
    %504 = vmatprep.subr.mxu0 0.0
    %505 = vmatpush2.msra.mxu0 0.0
    %506 = vmatprep.subr.mxu0 0.0
    %507 = vmatpush2.msra.mxu0 0.0
    %508 = vmatprep.subr.mxu0 0.0
    %509 = vmatpush2.msra.mxu0 0.0
    %510 = vmatprep.subr.mxu0 0.0
    %511 = vmatpush2.msra.mxu0 0.0
    %512 = vmatprep.mubr.f32.mxu0 0.0
    %513 = vmatmul.mubr.f32.gmra.mxu0 %v424
    %v514 = vpop.f32.mrf.mxu0
    %v515 = vadd.f32 %v446, %v514
    %v516 = vpop.f32.mrf.mxu0
    %517 = vdwg.mxu0
    %vm518 = vcmp.gt.f32.partialorder %v515, 0.0
    %v519 = vmul.f32 %v515, 0.01
    %v520 = vsel %vm518, %v515, %v519
    %v521 = vld [vmem:[#allocation11] sm:$0xff]
    %v522 = vld [vmem:[#allocation11 + $0x8] sm:$0xff]
    %v523 = vld [vmem:[#allocation11 + $0x10] sm:$0xff]
    %v524 = vld [vmem:[#allocation11 + $0x18] sm:$0xff]
    %v525 = vld [vmem:[#allocation11 + $0x20] sm:$0xff]
    %v526 = vld [vmem:[#allocation11 + $0x28] sm:$0xff]
    %v527 = vld [vmem:[#allocation11 + $0x30] sm:$0xff]
    %v528 = vld [vmem:[#allocation11 + $0x38] sm:$0xff]
    %v529 = vld [vmem:[#allocation11 + $0x40] sm:$0xff]
    %v530 = vld [vmem:[#allocation11 + $0x48] sm:$0xff]
    %v531 = vld [vmem:[#allocation11 + $0x50] sm:$0xff]
    %v532 = vld [vmem:[#allocation11 + $0x58] sm:$0xff]
    %v533 = vld [vmem:[#allocation11 + $0x60] sm:$0xff]
    %v534 = vld [vmem:[#allocation11 + $0x68] sm:$0xff]
    %v535 = vld [vmem:[#allocation11 + $0x70] sm:$0xff]
    %v536 = vld [vmem:[#allocation11 + $0x78] sm:$0xff]
    %v537 = vld [vmem:[%s10] sm:$0x1]
    %v539 = vlaneseq
    %v540 = vshrl.u32 %v539, 7
    %v541 = vsub.s32 0, %v540
    %v542 = vrot.slane %v537, %v541
    %544 = vmatprep.subr.mxu0 0.0
    %545 = vmatpush1.msra.mxu0 %v536
    %546 = vmatprep.subr.mxu0 0.0
    %547 = vmatpush1.msra.mxu0 %v535
    %548 = vmatprep.subr.mxu0 0.0
    %549 = vmatpush1.msra.mxu0 %v534
    %550 = vmatprep.subr.mxu0 0.0
    %551 = vmatpush1.msra.mxu0 %v533
    %552 = vmatprep.subr.mxu0 0.0
    %553 = vmatpush1.msra.mxu0 %v532
    %554 = vmatprep.subr.mxu0 0.0
    %555 = vmatpush1.msra.mxu0 %v531
    %556 = vmatprep.subr.mxu0 0.0
    %557 = vmatpush1.msra.mxu0 %v530
    %558 = vmatprep.subr.mxu0 0.0
    %559 = vmatpush1.msra.mxu0 %v529
    %560 = vmatprep.subr.mxu0 0.0
    %561 = vmatpush1.msra.mxu0 %v528
    %562 = vmatprep.subr.mxu0 0.0
    %563 = vmatpush1.msra.mxu0 %v527
    %564 = vmatprep.subr.mxu0 0.0
    %565 = vmatpush1.msra.mxu0 %v526
    %566 = vmatprep.subr.mxu0 0.0
    %567 = vmatpush1.msra.mxu0 %v525
    %568 = vmatprep.subr.mxu0 0.0
    %569 = vmatpush1.msra.mxu0 %v524
    %570 = vmatprep.subr.mxu0 0.0
    %571 = vmatpush1.msra.mxu0 %v523
    %572 = vmatprep.subr.mxu0 0.0
    %573 = vmatpush1.msra.mxu0 %v522
    %574 = vmatprep.subr.mxu0 0.0
    %575 = vmatpush1.msra.mxu0 %v521
    %576 = vmatprep.subr.mxu0 0.0
    %577 = vmatpush2.msra.mxu0 0.0
    %578 = vmatprep.subr.mxu0 0.0
    %579 = vmatpush2.msra.mxu0 0.0
    %580 = vmatprep.subr.mxu0 0.0
    %581 = vmatpush2.msra.mxu0 0.0
    %582 = vmatprep.subr.mxu0 0.0
    %583 = vmatpush2.msra.mxu0 0.0
    %584 = vmatprep.subr.mxu0 0.0
    %585 = vmatpush2.msra.mxu0 0.0
    %586 = vmatprep.subr.mxu0 0.0
    %587 = vmatpush2.msra.mxu0 0.0
    %588 = vmatprep.subr.mxu0 0.0
    %589 = vmatpush2.msra.mxu0 0.0
    %590 = vmatprep.subr.mxu0 0.0
    %591 = vmatpush2.msra.mxu0 0.0
    %592 = vmatprep.subr.mxu0 0.0
    %593 = vmatpush2.msra.mxu0 0.0
    %594 = vmatprep.subr.mxu0 0.0
    %595 = vmatpush2.msra.mxu0 0.0
    %596 = vmatprep.subr.mxu0 0.0
    %597 = vmatpush2.msra.mxu0 0.0
    %598 = vmatprep.subr.mxu0 0.0
    %599 = vmatpush2.msra.mxu0 0.0
    %600 = vmatprep.subr.mxu0 0.0
    %601 = vmatpush2.msra.mxu0 0.0
    %602 = vmatprep.subr.mxu0 0.0
    %603 = vmatpush2.msra.mxu0 0.0
    %604 = vmatprep.subr.mxu0 0.0
    %605 = vmatpush2.msra.mxu0 0.0
    %606 = vmatprep.subr.mxu0 0.0
    %607 = vmatpush2.msra.mxu0 0.0
    %608 = vmatprep.mubr.f32.mxu0 0.0
    %609 = vmatmul.mubr.f32.gmra.mxu0 %v520
    %v610 = vpop.f32.mrf.mxu0
    %v611 = vadd.f32 %v542, %v610
    %v612 = vpop.f32.mrf.mxu0
    %613 = vdwg.mxu0
    %v614 = vld [vmem:[#allocation13] sm:$0xff]
    %v615 = vld [vmem:[#allocation13 + $0x8] sm:$0xff]
    %v616 = vld [vmem:[#allocation13 + $0x10] sm:$0xff]
    %v617 = vld [vmem:[#allocation13 + $0x18] sm:$0xff]
    %v618 = vld [vmem:[#allocation13 + $0x20] sm:$0xff]
    %v619 = vld [vmem:[#allocation13 + $0x28] sm:$0xff]
    %v620 = vld [vmem:[#allocation13 + $0x30] sm:$0xff]
    %v621 = vld [vmem:[#allocation13 + $0x38] sm:$0xff]
    %v622 = vld [vmem:[#allocation13 + $0x40] sm:$0xff]
    %v623 = vld [vmem:[#allocation13 + $0x48] sm:$0xff]
    %v624 = vld [vmem:[#allocation13 + $0x50] sm:$0xff]
    %v625 = vld [vmem:[#allocation13 + $0x58] sm:$0xff]
    %v626 = vld [vmem:[#allocation13 + $0x60] sm:$0xff]
    %v627 = vld [vmem:[#allocation13 + $0x68] sm:$0xff]
    %v628 = vld [vmem:[#allocation13 + $0x70] sm:$0xff]
    %v629 = vld [vmem:[#allocation13 + $0x78] sm:$0xff]
    %v630 = vld [vmem:[%s12] sm:$0x1]
    %v632 = vlaneseq
    %v633 = vshrl.u32 %v632, 7
    %v634 = vsub.s32 0, %v633
    %v635 = vrot.slane %v630, %v634
    %637 = vmatprep.subr.mxu0 0.0
    %638 = vmatpush1.msra.mxu0 %v629
    %639 = vmatprep.subr.mxu0 0.0
    %640 = vmatpush1.msra.mxu0 %v628
    %641 = vmatprep.subr.mxu0 0.0
    %642 = vmatpush1.msra.mxu0 %v627
    %643 = vmatprep.subr.mxu0 0.0
    %644 = vmatpush1.msra.mxu0 %v626
    %645 = vmatprep.subr.mxu0 0.0
    %646 = vmatpush1.msra.mxu0 %v625
    %647 = vmatprep.subr.mxu0 0.0
    %648 = vmatpush1.msra.mxu0 %v624
    %649 = vmatprep.subr.mxu0 0.0
    %650 = vmatpush1.msra.mxu0 %v623
    %651 = vmatprep.subr.mxu0 0.0
    %652 = vmatpush1.msra.mxu0 %v622
    %653 = vmatprep.subr.mxu0 0.0
    %654 = vmatpush1.msra.mxu0 %v621
    %655 = vmatprep.subr.mxu0 0.0
    %656 = vmatpush1.msra.mxu0 %v620
    %657 = vmatprep.subr.mxu0 0.0
    %658 = vmatpush1.msra.mxu0 %v619
    %659 = vmatprep.subr.mxu0 0.0
    %660 = vmatpush1.msra.mxu0 %v618
    %661 = vmatprep.subr.mxu0 0.0
    %662 = vmatpush1.msra.mxu0 %v617
    %663 = vmatprep.subr.mxu0 0.0
    %664 = vmatpush1.msra.mxu0 %v616
    %665 = vmatprep.subr.mxu0 0.0
    %666 = vmatpush1.msra.mxu0 %v615
    %667 = vmatprep.subr.mxu0 0.0
    %668 = vmatpush1.msra.mxu0 %v614
    %669 = vmatprep.subr.mxu0 0.0
    %670 = vmatpush2.msra.mxu0 0.0
    %671 = vmatprep.subr.mxu0 0.0
    %672 = vmatpush2.msra.mxu0 0.0
    %673 = vmatprep.subr.mxu0 0.0
    %674 = vmatpush2.msra.mxu0 0.0
    %675 = vmatprep.subr.mxu0 0.0
    %676 = vmatpush2.msra.mxu0 0.0
    %677 = vmatprep.subr.mxu0 0.0
    %678 = vmatpush2.msra.mxu0 0.0
    %679 = vmatprep.subr.mxu0 0.0
    %680 = vmatpush2.msra.mxu0 0.0
    %681 = vmatprep.subr.mxu0 0.0
    %682 = vmatpush2.msra.mxu0 0.0
    %683 = vmatprep.subr.mxu0 0.0
    %684 = vmatpush2.msra.mxu0 0.0
    %685 = vmatprep.subr.mxu0 0.0
    %686 = vmatpush2.msra.mxu0 0.0
    %687 = vmatprep.subr.mxu0 0.0
    %688 = vmatpush2.msra.mxu0 0.0
    %689 = vmatprep.subr.mxu0 0.0
    %690 = vmatpush2.msra.mxu0 0.0
    %691 = vmatprep.subr.mxu0 0.0
    %692 = vmatpush2.msra.mxu0 0.0
    %693 = vmatprep.subr.mxu0 0.0
    %694 = vmatpush2.msra.mxu0 0.0
    %695 = vmatprep.subr.mxu0 0.0
    %696 = vmatpush2.msra.mxu0 0.0
    %697 = vmatprep.subr.mxu0 0.0
    %698 = vmatpush2.msra.mxu0 0.0
    %699 = vmatprep.subr.mxu0 0.0
    %700 = vmatpush2.msra.mxu0 0.0
    %701 = vmatprep.mubr.f32.mxu0 0.0
    %702 = vmatmul.mubr.f32.gmra.mxu0 %v424
    %v703 = vpop.f32.mrf.mxu0
    %v704 = vadd.f32 %v635, %v703
    %v705 = vpop.f32.mrf.mxu0
    %706 = vdwg.mxu0
    %v707 = vadd.f32 %v611, %v704
    %vm708 = vcmp.gt.f32.partialorder %v707, 0.0
    %v709 = vmul.f32 %v707, 0.01
    %v710 = vsel %vm708, %v707, %v709
    %711 = vst [vmem:[#allocation14] sm:$0xff] %v710
    // Predicated region
    $region82: #{tpu_custom_call.1} parent=1 // pred_check
      _
    $region83: #{tpu_custom_call.1} parent=1 // pred_check_branch
      %713 = sbr.rel (0) target = $region85
    $region84: #{tpu_custom_call.1} parent=1 // pred_region
      %s715 = ssub.s32 128, 128
      %716 = vsyncadd [#allocation4], %s715
      %s718 = sshll.u32 [#allocation14], 4
      %s719 = int_to_ptr.vmem [resolvable:$true] %s718
      %721 = dma.vmem_to_hbm [thread:$0]  %s719, 128, %s13, [#allocation4]
    $region85: #{tpu_custom_call.1} parent=1 // pred_fallthru
      _
    // Predicated region
    $region86: #{tpu_custom_call.1} parent=1 // pred_check
      _
    $region87: #{tpu_custom_call.1} parent=1 // pred_check_branch
      %723 = sbr.rel (0) target = $region89
    $region88: #{tpu_custom_call.1} parent=1 // pred_region
      %724 = dma.done [#allocation4], 128
    $region89: #{tpu_custom_call.1} parent=1 // pred_fallthru
      _
    %725 = vsyncpa [#allocation3], 1
    %726 = vsyncpa [#allocation6], 1
    %727 = vsyncpa [#allocation9], 1
    %728 = vsyncpa [#allocation12], 1
    %729 = vsyncpa [#allocation4], 1

</llo_original>
